<compile_context>
chip_gen: v5e
topology: v5e:2x2
jax: 0.10.0
libtpu: 0.0.40
codegen_flags: <defaults>
</compile_context>

<pallas_src>
import jax
import jax.numpy as jnp
from jax.experimental import pallas as pl
from jax.experimental.pallas import tpu as pltpu

NUM_BOND_TYPE = 7
NUM_BOND_DIRECTION = 3
NUM_ATOM_TYPE = 121
NUM_CHIRALITY_TAG = 11
BN_EPS = 1e-5
LANE = 128
EDGE_FEAT = 128  # lane-aligned count-matrix width (only first 10 columns are used)


def _round_up(x, m):
    return ((x + m - 1) // m) * m


# ----------------------------- Pallas kernel ------------------------------ #
def _fused_gin_kernel(n_ref,                       # SMEM (1,) int32: true node count
                      a_ref,                       # (Np, Np) bf16, resident (Buffered(1))
                      h0_ref,                      # (Np, Dp) f32, resident
                      cnt_ref,                     # (Np, EDGE_FEAT) f32, resident
                      etab_ref,                    # (1, EDGE_FEAT, Dp) f32, per-layer
                      w1_ref, b1_ref,              # (1, Dp, D2p) bf16, (1, 1, D2p) f32
                      w2_ref, b2_ref,              # (1, D2p, Dp) bf16, (1, 1, Dp) f32
                      gamma_ref, beta_ref,         # (1, 1, Dp) f32 each
                      out_ref):                    # (Np, Dp) f32 — layer-carried accumulator
    layer = pl.program_id(0)
    is_last = layer == pl.num_programs(0) - 1

    # Seed the resident output buffer with the atom embeddings on the first layer.
    @pl.when(layer == 0)
    def _():
        out_ref[...] = h0_ref[...]

    h_bf16 = out_ref[...].astype(jnp.bfloat16)

    # Per-layer edge-embedding sums reconstructed in-kernel:
    # esum[i] = sum_{e: dst(e)=i} (emb1[type_e] + emb2[dir_e]) = counts[i, :] @ etab.
    esum = jnp.dot(cnt_ref[...], etab_ref[0], preferred_element_type=jnp.float32)

    # GIN aggregation (aggr='add', self loops included): agg = A @ h + esum.
    agg = jnp.dot(a_ref[...], h_bf16, preferred_element_type=jnp.float32) + esum

    # GIN update MLP: Linear(D, 2D) -> ReLU -> Linear(2D, D).
    z = jnp.dot(agg.astype(jnp.bfloat16), w1_ref[0],
                preferred_element_type=jnp.float32) + b1_ref[0]
    z = jnp.maximum(z, 0.0)
    z = jnp.dot(z.astype(jnp.bfloat16), w2_ref[0],
                preferred_element_type=jnp.float32) + b2_ref[0]

    # BatchNorm1d, training-mode biased statistics over the TRUE node count only
    # (padded rows masked), fused into a single scale/shift.
    n_true = n_ref[0]
    row_ids = jax.lax.broadcasted_iota(jnp.int32, (z.shape[0], 1), 0)
    mask = (row_ids < n_true).astype(jnp.float32)          # (Np, 1)
    zm = z * mask
    inv_n = 1.0 / n_true.astype(jnp.float32)
    mean = jnp.sum(zm, axis=0, keepdims=True) * inv_n
    var = jnp.sum(zm * zm, axis=0, keepdims=True) * inv_n - mean * mean
    var = jnp.maximum(var, 0.0)                             # guard rsqrt against cancellation
    scale = gamma_ref[0] * jax.lax.rsqrt(var + BN_EPS)
    shift = beta_ref[0] - mean * scale
    y = z * scale + shift

    # ReLU on all layers except the last (JK='last'); dropout is a no-op (drop_ratio=0).
    @pl.when(jnp.logical_not(is_last))
    def _():
        out_ref[...] = jnp.maximum(y, 0.0)

    @pl.when(is_last)
    def _():
        out_ref[...] = y


def _vmem_limit_bytes(L, Np, Dp, D2p):
    resident = Np * Np * 2 + Np * Dp * 4 + Np * EDGE_FEAT * 4   # A, h0, cnt (single-buffered)
    per_layer = (EDGE_FEAT * Dp * 4 + Dp * D2p * 2 + D2p * 4
                 + D2p * Dp * 2 + 3 * Dp * 4)
    streamed = 2 * per_layer                                    # double-buffered layer params
    out = Np * Dp * 4                                           # resident output accumulator
    need = resident + streamed + out
    limit = int(need * 1.25) + (4 << 20)
    return max(min(limit, 64 << 20), 32 << 20)                  # fits v7x's 64 MiB physical VMEM


def fused_gin_forward(n_true, A_bf16, h0, cnt, etab, w1, b1, w2, b2, gamma, beta):
    """One pallas_call running all GIN layers; h stays resident in VMEM (out_ref)."""
    L, _, Dp = etab.shape
    Np = A_bf16.shape[0]
    D2p = w1.shape[2]

    single = pl.Buffered(1)   # constant block index -> no re-DMA, half the VMEM

    grid_spec = pltpu.PrefetchScalarGridSpec(
        num_scalar_prefetch=1,
        grid=(L,),
        in_specs=[
            pl.BlockSpec((Np, Np), lambda l, n: (0, 0), pipeline_mode=single),        # A (bf16)
            pl.BlockSpec((Np, Dp), lambda l, n: (0, 0), pipeline_mode=single),        # h0
            pl.BlockSpec((Np, EDGE_FEAT), lambda l, n: (0, 0), pipeline_mode=single), # counts
            pl.BlockSpec((1, EDGE_FEAT, Dp), lambda l, n: (l, 0, 0)),                 # edge tables
            pl.BlockSpec((1, Dp, D2p), lambda l, n: (l, 0, 0)),                       # W1 (bf16)
            pl.BlockSpec((1, 1, D2p), lambda l, n: (l, 0, 0)),                        # b1
            pl.BlockSpec((1, D2p, Dp), lambda l, n: (l, 0, 0)),                       # W2 (bf16)
            pl.BlockSpec((1, 1, Dp), lambda l, n: (l, 0, 0)),                         # b2
            pl.BlockSpec((1, 1, Dp), lambda l, n: (l, 0, 0)),                         # BN gamma
            pl.BlockSpec((1, 1, Dp), lambda l, n: (l, 0, 0)),                         # BN beta
        ],
        out_specs=pl.BlockSpec((Np, Dp), lambda l, n: (0, 0)),
    )
    return pl.pallas_call(
        _fused_gin_kernel,
        grid_spec=grid_spec,
        out_shape=jax.ShapeDtypeStruct((Np, Dp), jnp.float32),
        compiler_params=pltpu.CompilerParams(
            dimension_semantics=("arbitrary",),
            vmem_limit_bytes=_vmem_limit_bytes(L, Np, Dp, D2p)),
    )(n_true, A_bf16, h0, cnt, etab, w1, b1, w2, b2, gamma, beta)


# ------------------------------- glue / model ----------------------------- #
def xavier_uniform(key, shape):
    fan_in, fan_out = shape
    a = (6.0 / (fan_in + fan_out)) ** 0.5
    return jax.random.uniform(key, shape, jnp.float32, -a, a)


def init_params(key, hidden_size, num_layer):
    keys = jax.random.split(key, 2 + 6 * num_layer)
    params = {
        "x_emb1": xavier_uniform(keys[0], (NUM_ATOM_TYPE, hidden_size)),
        "x_emb2": xavier_uniform(keys[1], (NUM_CHIRALITY_TAG, hidden_size)),
        "layers": [],
    }
    for l in range(num_layer):
        k = keys[2 + 6 * l: 2 + 6 * (l + 1)]
        params["layers"].append({
            "edge_emb1": xavier_uniform(k[0], (NUM_BOND_TYPE, hidden_size)),
            "edge_emb2": xavier_uniform(k[1], (NUM_BOND_DIRECTION, hidden_size)),
            "w1": xavier_uniform(k[2], (hidden_size, 2 * hidden_size)),
            "b1": (0.01 * jax.random.normal(k[3], (1, 2 * hidden_size))).astype(jnp.float32),
            "w2": xavier_uniform(k[4], (2 * hidden_size, hidden_size)),
            "b2": (0.01 * jax.random.normal(k[5], (1, hidden_size))).astype(jnp.float32),
            "gamma": jnp.ones((1, hidden_size), jnp.float32),
            "beta": jnp.zeros((1, hidden_size), jnp.float32),
        })
    return params


def _pad2(x, rows, cols):
    return jnp.zeros((rows, cols), x.dtype).at[:x.shape[0], :x.shape[1]].set(x)


def gnn_encoder(node_x, edge_index, edge_attr, params):
    """GNN.forward (gin, JK='last', drop_ratio=0) — glue in XLA, hot path in Pallas."""
    N = node_x.shape[0]
    D = params["x_emb1"].shape[1]
    L = len(params["layers"])
    Np = max(LANE, _round_up(N, LANE))       # lane-align node axis
    Dp = max(LANE, _round_up(D, LANE))       # lane-align hidden dim (HiMol D=300 -> 384)
    D2p = max(LANE, _round_up(2 * D, LANE))  # lane-align MLP hidden dim (600 -> 640)

    # atom-type + chirality embeddings (gather glue), zero-padded to (Np, Dp)
    h0 = params["x_emb1"][node_x[:, 0]] + params["x_emb2"][node_x[:, 1]]
    h0 = _pad2(h0, Np, Dp)

    # GINConv adds self loops every layer (bond type 4, direction 0) -> precompute once
    loop = jnp.arange(N, dtype=jnp.int32)
    src = jnp.concatenate([edge_index[0], loop])
    dst = jnp.concatenate([edge_index[1], loop])
    self_loop_attr = jnp.concatenate(
        [jnp.full((N, 1), 4, jnp.int32), jnp.zeros((N, 1), jnp.int32)], axis=1)
    ea = jnp.concatenate([edge_attr, self_loop_attr], axis=0)

    # dense adjacency A[i, j] = multiplicity of directed edge j -> i, built directly in
    # bf16 (small integer counts -> exact). Padded rows/cols stay zero.
    A = jnp.zeros((Np, Np), jnp.bfloat16).at[dst, src].add(1.0)

    # per-node incoming bond-type / bond-direction counts (lane-aligned, f32 -> exact).
    cnt = jnp.zeros((Np, EDGE_FEAT), jnp.float32)
    cnt = cnt.at[dst, ea[:, 0]].add(1.0)
    cnt = cnt.at[dst, NUM_BOND_TYPE + ea[:, 1]].add(1.0)

    # per-layer stacked edge-embedding tables: rows 0..6 = edge_emb1, 7..9 = edge_emb2.
    etab = jnp.stack([
        _pad2(jnp.concatenate([lp["edge_emb1"], lp["edge_emb2"]], axis=0), EDGE_FEAT, Dp)
        for lp in params["layers"]], axis=0)                                    # (L, 128, Dp)

    # stack per-layer MLP / BN parameters, lane-padded (gamma padded with ZEROS so padded
    # feature columns stay identically zero through BN).
    w1 = jnp.stack([_pad2(lp["w1"], Dp, D2p) for lp in params["layers"]]).astype(jnp.bfloat16)
    b1 = jnp.stack([_pad2(lp["b1"], 1, D2p) for lp in params["layers"]])
    w2 = jnp.stack([_pad2(lp["w2"], D2p, Dp) for lp in params["layers"]]).astype(jnp.bfloat16)
    b2 = jnp.stack([_pad2(lp["b2"], 1, Dp) for lp in params["layers"]])
    gamma = jnp.stack([_pad2(lp["gamma"], 1, Dp) for lp in params["layers"]])
    beta = jnp.stack([_pad2(lp["beta"], 1, Dp) for lp in params["layers"]])

    n_true = jnp.array([N], jnp.int32)  # SMEM scalar: BN statistics use true node count

    out = fused_gin_forward(n_true, A, h0, cnt, etab, w1, b1, w2, b2, gamma, beta)
    return out[:N, :D]  # JK == 'last'


def gnn_reference(node_x, edge_index, edge_attr, params):
    """Pure-JAX f32 reference of GNN.forward (gin, JK='last') for validation."""
    N = node_x.shape[0]
    D = params["x_emb1"].shape[1]
    h = params["x_emb1"][node_x[:, 0]] + params["x_emb2"][node_x[:, 1]]
    loop = jnp.arange(N, dtype=jnp.int32)
    src = jnp.concatenate([edge_index[0], loop])
    dst = jnp.concatenate([edge_index[1], loop])
    self_loop_attr = jnp.concatenate(
        [jnp.full((N, 1), 4, jnp.int32), jnp.zeros((N, 1), jnp.int32)], axis=1)
    ea = jnp.concatenate([edge_attr, self_loop_attr], axis=0)
    L = len(params["layers"])
    for l, lp in enumerate(params["layers"]):
        e_emb = lp["edge_emb1"][ea[:, 0]] + lp["edge_emb2"][ea[:, 1]]
        agg = jnp.zeros((N, D), jnp.float32).at[dst].add(h[src] + e_emb)
        z = jnp.maximum(agg @ lp["w1"] + lp["b1"], 0.0) @ lp["w2"] + lp["b2"]
        mean = z.mean(axis=0, keepdims=True)
        var = ((z - mean) ** 2).mean(axis=0, keepdims=True)
        y = (z - mean) * jax.lax.rsqrt(var + BN_EPS) * lp["gamma"] + lp["beta"]
        h = y if l == L - 1 else jnp.maximum(y, 0.0)
    return h


def group_node_rep(node_rep, batch_size, num_part, hidden_size):
    """HiMolGraphTowerV2.group_node_rep (host-side ragged Python glue)."""
    group = []
    count = 0
    for i in range(batch_size):
        num_atom, num_motif = num_part[i]
        num_all = num_atom + num_motif + 1
        atom_group = node_rep[count:count + num_atom]
        if num_motif > 0:
            motif_group = node_rep[count + num_atom:count + num_atom + num_motif]
        else:
            # TODO(synk): reference hardcodes a (1, 300) NaN placeholder; use hidden_size here.
            motif_group = jnp.full((1, hidden_size), jnp.nan, jnp.float32)
        global_rep = node_rep[count + num_all - 1][None, :]
        group.append([atom_group, motif_group, global_rep])
        count += num_all
    return group


def himol_graph_tower_v2_forward(node_x, edge_index, edge_attr, params,
                                 batch_size, num_part):
    node_rep = gnn_encoder(node_x, edge_index, edge_attr, params)
    hidden_size = params["x_emb1"].shape[1]
    grouped = group_node_rep(node_rep, batch_size, num_part, hidden_size)
    return node_rep, grouped  # (raw node reps, GraphFeature-style nested list)


# --------------------------------- main ----------------------------------- #
if __name__ == "__main__":
    key = jax.random.PRNGKey(0)
    hidden_size = 128
    num_layer = 2
    batch_size = 2
    # per sample: (num_atom, num_motif); +1 global node each
    num_part = [(5, 2), (6, 0)]
    N = sum(a + m + 1 for a, m in num_part)  # 15 nodes total

    key, k1, k2, k3, k4, kp = jax.random.split(key, 6)
    node_x = jnp.stack([
        jax.random.randint(k1, (N,), 0, NUM_ATOM_TYPE),
        jax.random.randint(k2, (N,), 0, NUM_CHIRALITY_TAG)], axis=1).astype(jnp.int32)

    # directed edges; sample 0 occupies nodes 0..7, sample 1 occupies nodes 8..14
    src = jnp.array([0, 1, 1, 2, 2, 3, 3, 4, 0, 1, 2, 3, 5, 6,
                     8, 9, 9, 10, 10, 11, 11, 12, 12, 13, 8, 13], dtype=jnp.int32)
    dst = jnp.array([1, 0, 2, 1, 3, 2, 4, 3, 5, 5, 6, 6, 7, 7,
                     9, 8, 10, 9, 11, 10, 12, 11, 13, 12, 14, 14], dtype=jnp.int32)
    edge_index = jnp.stack([src, dst])
    E = src.shape[0]
    edge_attr = jnp.stack([
        jax.random.randint(k3, (E,), 0, NUM_BOND_TYPE),
        jax.random.randint(k4, (E,), 0, NUM_BOND_DIRECTION)], axis=1).astype(jnp.int32)

    params = init_params(kp, hidden_size, num_layer)

    node_rep, grouped = himol_graph_tower_v2_forward(
        node_x, edge_index, edge_attr, params, batch_size, num_part)
    jax.block_until_ready(node_rep)

    assert node_rep.shape == (N, hidden_size)
    assert bool(jnp.all(jnp.isfinite(node_rep)))
    assert len(grouped) == batch_size and len(grouped[0]) == 3

    # bf16 MXU matmuls with f32 accumulation -> ~1e-2-level deviation vs f32 reference.
    ref = gnn_reference(node_x, edge_index, edge_attr, params)
    assert bool(jnp.allclose(node_rep, ref, rtol=1e-1, atol=1e-1))

    print("KERNEL_OK")
</pallas_src>

<mosaic_0001>
module attributes {stable_mosaic.version = 11 : i64} {
  func.func @_fused_gin_kernel(%arg0: i32, %arg1: memref<1xi32, #tpu.memory_space<smem>>, %arg2: memref<128x128xbf16, #tpu.memory_space<vmem>>, %arg3: memref<128x128xf32, #tpu.memory_space<vmem>>, %arg4: memref<128x128xf32, #tpu.memory_space<vmem>>, %arg5: memref<1x128x128xf32, #tpu.memory_space<vmem>>, %arg6: memref<1x128x256xbf16, #tpu.memory_space<vmem>>, %arg7: memref<1x1x256xf32, #tpu.memory_space<vmem>>, %arg8: memref<1x256x128xbf16, #tpu.memory_space<vmem>>, %arg9: memref<1x1x128xf32, #tpu.memory_space<vmem>>, %arg10: memref<1x1x128xf32, #tpu.memory_space<vmem>>, %arg11: memref<1x1x128xf32, #tpu.memory_space<vmem>>, %arg12: memref<128x128xf32, #tpu.memory_space<vmem>>) attributes {dimension_semantics = [#tpu.dimension_semantics<arbitrary>], iteration_bounds = array<i64: 2>, scalar_prefetch = 1 : i64, scratch_operands = 0 : i64, tpu.core_type = #tpu.core_type<tc>, window_params = [{pipeline_mode = #tpu.pipeline_mode<synchronous>, transform_indices = @transform_0, window_bounds = array<i64: 128, 128>}, {pipeline_mode = #tpu.pipeline_mode<synchronous>, transform_indices = @transform_1, window_bounds = array<i64: 128, 128>}, {pipeline_mode = #tpu.pipeline_mode<synchronous>, transform_indices = @transform_2, window_bounds = array<i64: 128, 128>}, {transform_indices = @transform_3, window_bounds = array<i64: 1, 128, 128>}, {transform_indices = @transform_4, window_bounds = array<i64: 1, 128, 256>}, {transform_indices = @transform_5, window_bounds = array<i64: 1, 1, 256>}, {transform_indices = @transform_6, window_bounds = array<i64: 1, 256, 128>}, {transform_indices = @transform_7, window_bounds = array<i64: 1, 1, 128>}, {transform_indices = @transform_8, window_bounds = array<i64: 1, 1, 128>}, {transform_indices = @transform_9, window_bounds = array<i64: 1, 1, 128>}, {pipeline_mode = #tpu.pipeline_mode<synchronous>, transform_indices = @transform_10, window_bounds = array<i64: 128, 128>}]} {
    %c1_i32 = arith.constant 1 : i32
    %0 = arith.cmpi eq, %arg0, %c1_i32 : i32
    %c0_i32 = arith.constant 0 : i32
    %1 = arith.cmpi eq, %arg0, %c0_i32 : i32
    %2 = arith.extui %1 : i1 to i32
    %c0_i32_0 = arith.constant 0 : i32
    %3 = arith.cmpi ne, %2, %c0_i32_0 : i32
    scf.if %3 {
      %c0_39 = arith.constant 0 : index
      %c0_40 = arith.constant 0 : index
      %73 = vector.load %arg3[%c0_39, %c0_40] : memref<128x128xf32, #tpu.memory_space<vmem>>, vector<128x128xf32>
      %c0_41 = arith.constant 0 : index
      %c0_42 = arith.constant 0 : index
      %74 = vector.load %arg12[%c0_41, %c0_42] : memref<128x128xf32, #tpu.memory_space<vmem>>, vector<128x128xf32>
      tpu.vector_store %arg12[%c0_41, %c0_42], %73 {strides = array<i32>} : memref<128x128xf32, #tpu.memory_space<vmem>>, vector<128x128xf32>,
    } else {
    }
    %c0 = arith.constant 0 : index
    %c0_1 = arith.constant 0 : index
    %4 = vector.load %arg12[%c0, %c0_1] : memref<128x128xf32, #tpu.memory_space<vmem>>, vector<128x128xf32>
    %5 = arith.truncf %4 : vector<128x128xf32> to vector<128x128xbf16>
    %c0_2 = arith.constant 0 : index
    %c0_3 = arith.constant 0 : index
    %6 = vector.load %arg4[%c0_2, %c0_3] : memref<128x128xf32, #tpu.memory_space<vmem>>, vector<128x128xf32>
    %c0_4 = arith.constant 0 : index
    %c0_5 = arith.constant 0 : index
    %c0_6 = arith.constant 0 : index
    %7 = vector.load %arg5[%c0_4, %c0_5, %c0_6] : memref<1x128x128xf32, #tpu.memory_space<vmem>>, vector<1x128x128xf32>
    %8 = vector.shape_cast %7 : vector<1x128x128xf32> to vector<128x128xf32>
    %cst = arith.constant dense<0.000000e+00> : vector<128x128xf32>
    %9 = tpu.matmul %6, %8, %cst {dimension_numbers = #tpu.dot_dimension_numbers<[1], [0], [0], [1], [0, 0, 1, 1], [], []>} : vector<128x128xf32>, vector<128x128xf32>, vector<128x128xf32> -> vector<128x128xf32>
    %c0_7 = arith.constant 0 : index
    %c0_8 = arith.constant 0 : index
    %10 = vector.load %arg2[%c0_7, %c0_8] : memref<128x128xbf16, #tpu.memory_space<vmem>>, vector<128x128xbf16>
    %cst_9 = arith.constant dense<0.000000e+00> : vector<128x128xf32>
    %11 = tpu.matmul %10, %5, %cst_9 {dimension_numbers = #tpu.dot_dimension_numbers<[1], [0], [0], [1], [0, 0, 1, 1], [], []>} : vector<128x128xbf16>, vector<128x128xbf16>, vector<128x128xf32> -> vector<128x128xf32>
    %12 = arith.addf %11, %9 : vector<128x128xf32>
    %13 = arith.truncf %12 : vector<128x128xf32> to vector<128x128xbf16>
    %c0_10 = arith.constant 0 : index
    %c0_11 = arith.constant 0 : index
    %c0_12 = arith.constant 0 : index
    %14 = vector.load %arg6[%c0_10, %c0_11, %c0_12] : memref<1x128x256xbf16, #tpu.memory_space<vmem>>, vector<1x128x256xbf16>
    %15 = vector.shape_cast %14 : vector<1x128x256xbf16> to vector<128x256xbf16>
    %cst_13 = arith.constant dense<0.000000e+00> : vector<128x256xf32>
    %16 = tpu.matmul %13, %15, %cst_13 {dimension_numbers = #tpu.dot_dimension_numbers<[1], [0], [0], [1], [0, 0, 1, 1], [], []>} : vector<128x128xbf16>, vector<128x256xbf16>, vector<128x256xf32> -> vector<128x256xf32>
    %c0_14 = arith.constant 0 : index
    %c0_15 = arith.constant 0 : index
    %c0_16 = arith.constant 0 : index
    %17 = vector.load %arg7[%c0_14, %c0_15, %c0_16] : memref<1x1x256xf32, #tpu.memory_space<vmem>>, vector<1x1x256xf32>
    %18 = vector.shape_cast %17 : vector<1x1x256xf32> to vector<1x256xf32>
    %19 = vector.broadcast %18 : vector<1x256xf32> to vector<128x256xf32>
    %20 = arith.addf %16, %19 : vector<128x256xf32>
    %cst_17 = arith.constant 0.000000e+00 : f32
    %21 = vector.broadcast %cst_17 : f32 to vector<128x256xf32>
    %22 = arith.maximumf %20, %21 : vector<128x256xf32>
    %23 = arith.truncf %22 : vector<128x256xf32> to vector<128x256xbf16>
    %c0_18 = arith.constant 0 : index
    %c0_19 = arith.constant 0 : index
    %c0_20 = arith.constant 0 : index
    %24 = vector.load %arg8[%c0_18, %c0_19, %c0_20] : memref<1x256x128xbf16, #tpu.memory_space<vmem>>, vector<1x256x128xbf16>
    %25 = vector.shape_cast %24 : vector<1x256x128xbf16> to vector<256x128xbf16>
    %cst_21 = arith.constant dense<0.000000e+00> : vector<128x128xf32>
    %26 = tpu.matmul %23, %25, %cst_21 {dimension_numbers = #tpu.dot_dimension_numbers<[1], [0], [0], [1], [0, 0, 1, 1], [], []>} : vector<128x256xbf16>, vector<256x128xbf16>, vector<128x128xf32> -> vector<128x128xf32>
    %c0_22 = arith.constant 0 : index
    %c0_23 = arith.constant 0 : index
    %c0_24 = arith.constant 0 : index
    %27 = vector.load %arg9[%c0_22, %c0_23, %c0_24] : memref<1x1x128xf32, #tpu.memory_space<vmem>>, vector<1x1x128xf32>
    %28 = vector.shape_cast %27 : vector<1x1x128xf32> to vector<1x128xf32>
    %29 = vector.broadcast %28 : vector<1x128xf32> to vector<128x128xf32>
    %30 = arith.addf %26, %29 : vector<128x128xf32>
    %c0_25 = arith.constant 0 : index
    %31 = memref.load %arg1[%c0_25] : memref<1xi32, #tpu.memory_space<smem>>
    %32 = tpu.iota {dimensions = array<i32: 0>} : vector<128x1xi32>
    %33 = vector.broadcast %31 : i32 to vector<128x1xi32>
    %34 = arith.cmpi slt, %32, %33 : vector<128x1xi32>
    %35 = arith.extui %34 : vector<128x1xi1> to vector<128x1xi32>
    %36 = arith.sitofp %35 : vector<128x1xi32> to vector<128x1xf32>
    %37 = vector.broadcast %36 : vector<128x1xf32> to vector<128x128xf32>
    %38 = arith.mulf %30, %37 : vector<128x128xf32>
    %39 = arith.sitofp %31 : i32 to f32
    %cst_26 = arith.constant 1.000000e+00 : f32
    %40 = arith.divf %cst_26, %39 : f32
    %cst_27 = arith.constant dense<0.000000e+00> : vector<128xf32>
    %41 = vector.multi_reduction <add>, %38, %cst_27 [0] : vector<128x128xf32> to vector<128xf32>
    %42 = vector.shape_cast %41 : vector<128xf32> to vector<1x128xf32>
    %43 = vector.broadcast %40 : f32 to vector<1x128xf32>
    %44 = arith.mulf %42, %43 : vector<1x128xf32>
    %45 = arith.mulf %38, %38 : vector<128x128xf32>
    %cst_28 = arith.constant dense<0.000000e+00> : vector<128xf32>
    %46 = vector.multi_reduction <add>, %45, %cst_28 [0] : vector<128x128xf32> to vector<128xf32>
    %47 = vector.shape_cast %46 : vector<128xf32> to vector<1x128xf32>
    %48 = vector.broadcast %40 : f32 to vector<1x128xf32>
    %49 = arith.mulf %47, %48 : vector<1x128xf32>
    %50 = arith.mulf %44, %44 : vector<1x128xf32>
    %51 = arith.subf %49, %50 : vector<1x128xf32>
    %cst_29 = arith.constant 0.000000e+00 : f32
    %52 = vector.broadcast %cst_29 : f32 to vector<1x128xf32>
    %53 = arith.maximumf %51, %52 : vector<1x128xf32>
    %c0_30 = arith.constant 0 : index
    %c0_31 = arith.constant 0 : index
    %c0_32 = arith.constant 0 : index
    %54 = vector.load %arg10[%c0_30, %c0_31, %c0_32] : memref<1x1x128xf32, #tpu.memory_space<vmem>>, vector<1x1x128xf32>
    %55 = vector.shape_cast %54 : vector<1x1x128xf32> to vector<1x128xf32>
    %cst_33 = arith.constant 9.99999974E-6 : f32
    %56 = vector.broadcast %cst_33 : f32 to vector<1x128xf32>
    %57 = arith.addf %53, %56 : vector<1x128xf32>
    %58 = math.rsqrt %57 : vector<1x128xf32>
    %59 = arith.mulf %55, %58 : vector<1x128xf32>
    %c0_34 = arith.constant 0 : index
    %c0_35 = arith.constant 0 : index
    %c0_36 = arith.constant 0 : index
    %60 = vector.load %arg11[%c0_34, %c0_35, %c0_36] : memref<1x1x128xf32, #tpu.memory_space<vmem>>, vector<1x1x128xf32>
    %61 = vector.shape_cast %60 : vector<1x1x128xf32> to vector<1x128xf32>
    %62 = arith.mulf %44, %59 : vector<1x128xf32>
    %63 = arith.subf %61, %62 : vector<1x128xf32>
    %64 = vector.broadcast %59 : vector<1x128xf32> to vector<128x128xf32>
    %65 = arith.mulf %30, %64 : vector<128x128xf32>
    %66 = vector.broadcast %63 : vector<1x128xf32> to vector<128x128xf32>
    %67 = arith.addf %65, %66 : vector<128x128xf32>
    %true = arith.constant true
    %68 = arith.xori %0, %true : i1
    %69 = arith.extui %68 : i1 to i32
    %c0_i32_37 = arith.constant 0 : i32
    %70 = arith.cmpi ne, %69, %c0_i32_37 : i32
    scf.if %70 {
      %cst_39 = arith.constant 0.000000e+00 : f32
      %73 = vector.broadcast %cst_39 : f32 to vector<128x128xf32>
      %74 = arith.maximumf %67, %73 : vector<128x128xf32>
      %c0_40 = arith.constant 0 : index
      %c0_41 = arith.constant 0 : index
      %75 = vector.load %arg12[%c0_40, %c0_41] : memref<128x128xf32, #tpu.memory_space<vmem>>, vector<128x128xf32>
      tpu.vector_store %arg12[%c0_40, %c0_41], %74 {strides = array<i32>} : memref<128x128xf32, #tpu.memory_space<vmem>>, vector<128x128xf32>,
    } else {
    }
    %71 = arith.extui %0 : i1 to i32
    %c0_i32_38 = arith.constant 0 : i32
    %72 = arith.cmpi ne, %71, %c0_i32_38 : i32
    scf.if %72 {
      %c0_39 = arith.constant 0 : index
      %c0_40 = arith.constant 0 : index
      %73 = vector.load %arg12[%c0_39, %c0_40] : memref<128x128xf32, #tpu.memory_space<vmem>>, vector<128x128xf32>
      tpu.vector_store %arg12[%c0_39, %c0_40], %67 {strides = array<i32>} : memref<128x128xf32, #tpu.memory_space<vmem>>, vector<128x128xf32>,
    } else {
    }
    return
  }
  func.func @transform_0(%arg0: i32, %arg1: memref<1xi32, #tpu.memory_space<smem>>) -> (i32, i32) {
    %c0_i32 = arith.constant 0 : i32
    %c0_i32_0 = arith.constant 0 : i32
    %c0_i32_1 = arith.constant 0 : i32
    return %c0_i32, %c0_i32_0 : i32, i32
  }
  func.func @transform_1(%arg0: i32, %arg1: memref<1xi32, #tpu.memory_space<smem>>) -> (i32, i32) {
    %c0_i32 = arith.constant 0 : i32
    %c0_i32_0 = arith.constant 0 : i32
    %c0_i32_1 = arith.constant 0 : i32
    return %c0_i32, %c0_i32_0 : i32, i32
  }
  func.func @transform_2(%arg0: i32, %arg1: memref<1xi32, #tpu.memory_space<smem>>) -> (i32, i32) {
    %c0_i32 = arith.constant 0 : i32
    %c0_i32_0 = arith.constant 0 : i32
    %c0_i32_1 = arith.constant 0 : i32
    return %c0_i32, %c0_i32_0 : i32, i32
  }
  func.func @transform_3(%arg0: i32, %arg1: memref<1xi32, #tpu.memory_space<smem>>) -> (i32, i32, i32) {
    %c0_i32 = arith.constant 0 : i32
    %c0_i32_0 = arith.constant 0 : i32
    %c0_i32_1 = arith.constant 0 : i32
    return %arg0, %c0_i32, %c0_i32_0 : i32, i32, i32
  }
  func.func @transform_4(%arg0: i32, %arg1: memref<1xi32, #tpu.memory_space<smem>>) -> (i32, i32, i32) {
    %c0_i32 = arith.constant 0 : i32
    %c0_i32_0 = arith.constant 0 : i32
    %c0_i32_1 = arith.constant 0 : i32
    return %arg0, %c0_i32, %c0_i32_0 : i32, i32, i32
  }
  func.func @transform_5(%arg0: i32, %arg1: memref<1xi32, #tpu.memory_space<smem>>) -> (i32, i32, i32) {
    %c0_i32 = arith.constant 0 : i32
    %c0_i32_0 = arith.constant 0 : i32
    %c0_i32_1 = arith.constant 0 : i32
    return %arg0, %c0_i32, %c0_i32_0 : i32, i32, i32
  }
  func.func @transform_6(%arg0: i32, %arg1: memref<1xi32, #tpu.memory_space<smem>>) -> (i32, i32, i32) {
    %c0_i32 = arith.constant 0 : i32
    %c0_i32_0 = arith.constant 0 : i32
    %c0_i32_1 = arith.constant 0 : i32
    return %arg0, %c0_i32, %c0_i32_0 : i32, i32, i32
  }
  func.func @transform_7(%arg0: i32, %arg1: memref<1xi32, #tpu.memory_space<smem>>) -> (i32, i32, i32) {
    %c0_i32 = arith.constant 0 : i32
    %c0_i32_0 = arith.constant 0 : i32
    %c0_i32_1 = arith.constant 0 : i32
    return %arg0, %c0_i32, %c0_i32_0 : i32, i32, i32
  }
  func.func @transform_8(%arg0: i32, %arg1: memref<1xi32, #tpu.memory_space<smem>>) -> (i32, i32, i32) {
    %c0_i32 = arith.constant 0 : i32
    %c0_i32_0 = arith.constant 0 : i32
    %c0_i32_1 = arith.constant 0 : i32
    return %arg0, %c0_i32, %c0_i32_0 : i32, i32, i32
  }
  func.func @transform_9(%arg0: i32, %arg1: memref<1xi32, #tpu.memory_space<smem>>) -> (i32, i32, i32) {
    %c0_i32 = arith.constant 0 : i32
    %c0_i32_0 = arith.constant 0 : i32
    %c0_i32_1 = arith.constant 0 : i32
    return %arg0, %c0_i32, %c0_i32_0 : i32, i32, i32
  }
  func.func @transform_10(%arg0: i32, %arg1: memref<1xi32, #tpu.memory_space<smem>>) -> (i32, i32) {
    %c0_i32 = arith.constant 0 : i32
    %c0_i32_0 = arith.constant 0 : i32
    %c0_i32_1 = arith.constant 0 : i32
    return %c0_i32, %c0_i32_0 : i32, i32
  }
}

</mosaic_0001>

<llo_original>
// kernel: tpu_custom_call.1
$region0: #{tpu_custom_call.1}
  #allocation0 [shape = 'u32[]', space=smem, size = 0x4, offset = 0x4, fixed_abs, tag = 'smem constant byte address 0x4 - core index']
  #allocation1 [shape = 'u32[72,128]{1,0:T(1,128)}', space=vmem, size = 0x9000, scoped, tag = 'internal scratch']
  #allocation2 [shape = 's32[1]{0}', space=sflag, size = 0x4, scoped, tag = 'scoped memory for tpu_custom_call.1']
  #allocation3 [shape = 's32[1]{0:T(128)S(6)}', space=smem, size = 0x200, scoped, tag = 'prefetched SMEM operand 0']
  %s0 = inlined_call_operand.<no memory space> [shape: s32[1], index: 0, kind: input, shape index: {}]
  %s1 = inlined_call_operand.hbm [shape: bf16[128,128], index: 1, kind: input, shape index: {}]
  %s2 = inlined_call_operand.hbm [shape: f32[128,128], index: 2, kind: input, shape index: {}]
  %s3 = inlined_call_operand.hbm [shape: f32[128,128], index: 3, kind: input, shape index: {}]
  %s4 = inlined_call_operand.hbm [shape: f32[2,128,128], index: 4, kind: input, shape index: {}]
  %s5 = inlined_call_operand.hbm [shape: bf16[2,128,256], index: 5, kind: input, shape index: {}]
  %s6 = inlined_call_operand.vmem [shape: f32[2,1,256], index: 6, kind: input, shape index: {}]
  %s7 = inlined_call_operand.hbm [shape: bf16[2,256,128], index: 7, kind: input, shape index: {}]
  %s8 = inlined_call_operand.vmem [shape: f32[2,1,128], index: 8, kind: input, shape index: {}]
  %s9 = inlined_call_operand.vmem [shape: f32[2,1,128], index: 9, kind: input, shape index: {}]
  %s10 = inlined_call_operand.vmem [shape: f32[2,1,128], index: 10, kind: input, shape index: {}]
  %s11 = inlined_call_operand.hbm [shape: f32[128,128], index: 11, kind: output, shape index: {}]
  %s12 = sld [smem:[#allocation0]]
  $region109: #{tpu_custom_call.1} parent=0
    _
  %s14 = ssub.s32 1, %s12
  %s15 = scalar_select 0, %s14, %s12
  %16 = sst [smem:[#allocation3]] %s0
  $region1: #{tpu_custom_call.1} parent=0
    #allocation4 [shape = 'u8[32768]{0}', space=vmem, size = 0x8000, scoped, tag = 'input window, operand 1, single buffered']
    #allocation5 [shape = 's32[2]{0}', space=sflag, size = 0x8, scoped, tag = 'scoped memory for tpu_custom_call.1']
    #allocation6 [shape = 's32[2]{0}', space=sflag, size = 0x8, scoped, tag = 'scoped memory for tpu_custom_call.1']
    #allocation7 [shape = 'u8[65536]{0}', space=vmem, size = 0x10000, scoped, tag = 'input window, operand 2, single buffered']
    #allocation8 [shape = 's32[1]{0}', space=sflag, size = 0x4, scoped, tag = 'scoped memory for tpu_custom_call.1']
    #allocation9 [shape = 'u8[65536]{0}', space=vmem, size = 0x10000, scoped, tag = 'input window, operand 3, single buffered']
    #allocation10 [shape = 'u8[131072]{0}', space=vmem, size = 0x20000, scoped, tag = 'input window, operand 4']
    #allocation11 [shape = 's32[2]{0}', space=sflag, size = 0x8, scoped, tag = 'scoped memory for tpu_custom_call.1']
    #allocation12 [shape = 'u8[131072]{0}', space=vmem, size = 0x20000, scoped, tag = 'input window, operand 5']
    #allocation13 [shape = 'u8[131072]{0}', space=vmem, size = 0x20000, scoped, tag = 'input window, operand 7']
    #allocation14 [shape = 's32[2]{0}', space=sflag, size = 0x8, scoped, tag = 'scoped memory for tpu_custom_call.1']
    #allocation15 [shape = 'u8[65536]{0}', space=vmem, size = 0x10000, scoped, tag = 'output window, operand 0, single buffered']
    %17 = vsyncpa [#allocation5], 0
    %18 = vsyncpa [#allocation8], 0
    %19 = vsyncpa [#allocation11], 0
    %s20 = scalar_lea.sflag [#allocation11], 1
    %21 = vsyncpa %s20, 0
    %22 = vsyncpa [#allocation14], 0
    %s23 = scalar_lea.sflag [#allocation14], 1
    %24 = vsyncpa %s23, 0
    %25 = vsyncpa [#allocation6], 0
    loop: start=0, step=1, limit=4
    $region2: #{tpu_custom_call.1} parent=1 // loop_pre_header
      _
    $region3: #{tpu_custom_call.1} parent=1 // loop_header
      %s27 = sphi 0, %s31
      %p28 = scmp.ge.s32.totalorder %s27, 4
      %s35 = sphi 0, %s35
      %s37 = sphi 0, %s35
      %s38 = sphi 0, %s37
      %s52 = sphi 0, %s38
      %s56 = sphi 0, %s56
      %s58 = sphi 0, %s56
      %s59 = sphi 0, %s58
      %s73 = sphi 0, %s59
      %s77 = sphi 0, %s77
      %s79 = sphi 0, %s77
      %s80 = sphi 0, %s79
      %s94 = sphi 0, %s80
      %s100 = sphi 0, %s102
      %s103 = sphi 0, %s100
      %s104 = sphi 0, %s103
      %s120 = sphi 0, %s104
      %s126 = sphi 0, %s128
      %s129 = sphi 0, %s126
      %s130 = sphi 0, %s129
      %s146 = sphi 0, %s130
      %s152 = sphi 0, %s154
      %s155 = sphi 0, %s152
      %s156 = sphi 0, %s155
      %s172 = sphi 0, %s156
      %s178 = sphi 0, %s180
      %s181 = sphi 0, %s178
      %s182 = sphi 0, %s181
      %s198 = sphi 0, %s182
      %s204 = sphi 0, %s206
      %s207 = sphi 0, %s204
      %s208 = sphi 0, %s207
      %s224 = sphi 0, %s208
      %s230 = sphi 0, %s232
      %s233 = sphi 0, %s230
      %s234 = sphi 0, %s233
      %s250 = sphi 0, %s234
      %s256 = sphi 0, %s258
      %s259 = sphi 0, %s256
      %s260 = sphi 0, %s259
      %s276 = sphi 0, %s260
      %s280 = sphi 0, %s280
      %s282 = sphi 0, %s280
      %s283 = sphi 0, %s282
      %s297 = sphi 0, %s283
    $region4: #{tpu_custom_call.1} parent=1 // loop_header_branch
      %30 = sbr.rel (%p28) target = $region8
    $region5: #{tpu_custom_call.1} parent=1 // loop_body
      %s32 = ssub.s32 %s27, 1
      %s33 = ssub.s32 %s27, 2
      %s34 = sadd.s32 %s27, 1
      %s36 = sadd.s32 %s35, 1
      %p39 = scmp.eq.s32.totalorder %s27, 1
      %p40 = scmp.ne.s32.totalorder %s35, %s37
      %p41 = scmp.eq.s32.totalorder %s27, 0
      %p42 = por %p40, %p41
      %p43 = scmp.ne.s32.totalorder %s35, %s37
      %p44 = scmp.eq.s32.totalorder %s32, 1
      %p45 = por %p43, %p44
      %p46 = scmp.ne.s32.totalorder %s37, %s38
      %p47 = scmp.eq.s32.totalorder %s32, 0
      %p48 = por %p46, %p47
      %p49 = scmp.ne.s32.totalorder %s37, %s38
      %p50 = scmp.eq.s32.totalorder %s33, 1
      %p51 = por %p49, %p50
      %p53 = scmp.ne.s32.totalorder %s38, %s52
      %p54 = scmp.eq.s32.totalorder %s33, 0
      %p55 = por %p53, %p54
      %s57 = sadd.s32 %s56, 1
      %p60 = scmp.eq.s32.totalorder %s27, 1
      %p61 = scmp.ne.s32.totalorder %s56, %s58
      %p62 = scmp.eq.s32.totalorder %s27, 0
      %p63 = por %p61, %p62
      %p64 = scmp.ne.s32.totalorder %s56, %s58
      %p65 = scmp.eq.s32.totalorder %s32, 1
      %p66 = por %p64, %p65
      %p67 = scmp.ne.s32.totalorder %s58, %s59
      %p68 = scmp.eq.s32.totalorder %s32, 0
      %p69 = por %p67, %p68
      %p70 = scmp.ne.s32.totalorder %s58, %s59
      %p71 = scmp.eq.s32.totalorder %s33, 1
      %p72 = por %p70, %p71
      %p74 = scmp.ne.s32.totalorder %s59, %s73
      %p75 = scmp.eq.s32.totalorder %s33, 0
      %p76 = por %p74, %p75
      %s78 = sadd.s32 %s77, 1
      %p81 = scmp.eq.s32.totalorder %s27, 1
      %p82 = scmp.ne.s32.totalorder %s77, %s79
      %p83 = scmp.eq.s32.totalorder %s27, 0
      %p84 = por %p82, %p83
      %p85 = scmp.ne.s32.totalorder %s77, %s79
      %p86 = scmp.eq.s32.totalorder %s32, 1
      %p87 = por %p85, %p86
      %p88 = scmp.ne.s32.totalorder %s79, %s80
      %p89 = scmp.eq.s32.totalorder %s32, 0
      %p90 = por %p88, %p89
      %p91 = scmp.ne.s32.totalorder %s79, %s80
      %p92 = scmp.eq.s32.totalorder %s33, 1
      %p93 = por %p91, %p92
      %p95 = scmp.ne.s32.totalorder %s80, %s94
      %p96 = scmp.eq.s32.totalorder %s33, 0
      %p97 = por %p95, %p96
      %s98 = ssub.s32 %s27, %s34
      %p99 = scmp.eq.s32.totalorder %s98, 0
      %s101 = sadd.s32 %s100, 1
      %s102 = scalar_select %p99, %s100, %s101
      %p105 = pneg %p99
      %p106 = scmp.eq.s32.totalorder %s27, 1
      %p107 = por %p105, %p106
      %p108 = scmp.ne.s32.totalorder %s100, %s103
      %p109 = scmp.eq.s32.totalorder %s27, 0
      %p110 = por %p108, %p109
      %p111 = scmp.ne.s32.totalorder %s100, %s103
      %p112 = scmp.eq.s32.totalorder %s32, 1
      %p113 = por %p111, %p112
      %p114 = scmp.ne.s32.totalorder %s103, %s104
      %p115 = scmp.eq.s32.totalorder %s32, 0
      %p116 = por %p114, %p115
      %p117 = scmp.ne.s32.totalorder %s103, %s104
      %p118 = scmp.eq.s32.totalorder %s33, 1
      %p119 = por %p117, %p118
      %p121 = scmp.ne.s32.totalorder %s104, %s120
      %p122 = scmp.eq.s32.totalorder %s33, 0
      %p123 = por %p121, %p122
      %s124 = ssub.s32 %s27, %s34
      %p125 = scmp.eq.s32.totalorder %s124, 0
      %s127 = sadd.s32 %s126, 1
      %s128 = scalar_select %p125, %s126, %s127
      %p131 = pneg %p125
      %p132 = scmp.eq.s32.totalorder %s27, 1
      %p133 = por %p131, %p132
      %p134 = scmp.ne.s32.totalorder %s126, %s129
      %p135 = scmp.eq.s32.totalorder %s27, 0
      %p136 = por %p134, %p135
      %p137 = scmp.ne.s32.totalorder %s126, %s129
      %p138 = scmp.eq.s32.totalorder %s32, 1
      %p139 = por %p137, %p138
      %p140 = scmp.ne.s32.totalorder %s129, %s130
      %p141 = scmp.eq.s32.totalorder %s32, 0
      %p142 = por %p140, %p141
      %p143 = scmp.ne.s32.totalorder %s129, %s130
      %p144 = scmp.eq.s32.totalorder %s33, 1
      %p145 = por %p143, %p144
      %p147 = scmp.ne.s32.totalorder %s130, %s146
      %p148 = scmp.eq.s32.totalorder %s33, 0
      %p149 = por %p147, %p148
      %s150 = ssub.s32 %s27, %s34
      %p151 = scmp.eq.s32.totalorder %s150, 0
      %s153 = sadd.s32 %s152, 1
      %s154 = scalar_select %p151, %s152, %s153
      %p157 = pneg %p151
      %p158 = scmp.eq.s32.totalorder %s27, 1
      %p159 = por %p157, %p158
      %p160 = scmp.ne.s32.totalorder %s152, %s155
      %p161 = scmp.eq.s32.totalorder %s27, 0
      %p162 = por %p160, %p161
      %p163 = scmp.ne.s32.totalorder %s152, %s155
      %p164 = scmp.eq.s32.totalorder %s32, 1
      %p165 = por %p163, %p164
      %p166 = scmp.ne.s32.totalorder %s155, %s156
      %p167 = scmp.eq.s32.totalorder %s32, 0
      %p168 = por %p166, %p167
      %p169 = scmp.ne.s32.totalorder %s155, %s156
      %p170 = scmp.eq.s32.totalorder %s33, 1
      %p171 = por %p169, %p170
      %p173 = scmp.ne.s32.totalorder %s156, %s172
      %p174 = scmp.eq.s32.totalorder %s33, 0
      %p175 = por %p173, %p174
      %s176 = ssub.s32 %s27, %s34
      %p177 = scmp.eq.s32.totalorder %s176, 0
      %s179 = sadd.s32 %s178, 1
      %s180 = scalar_select %p177, %s178, %s179
      %p183 = pneg %p177
      %p184 = scmp.eq.s32.totalorder %s27, 1
      %p185 = por %p183, %p184
      %p186 = scmp.ne.s32.totalorder %s178, %s181
      %p187 = scmp.eq.s32.totalorder %s27, 0
      %p188 = por %p186, %p187
      %p189 = scmp.ne.s32.totalorder %s178, %s181
      %p190 = scmp.eq.s32.totalorder %s32, 1
      %p191 = por %p189, %p190
      %p192 = scmp.ne.s32.totalorder %s181, %s182
      %p193 = scmp.eq.s32.totalorder %s32, 0
      %p194 = por %p192, %p193
      %p195 = scmp.ne.s32.totalorder %s181, %s182
      %p196 = scmp.eq.s32.totalorder %s33, 1
      %p197 = por %p195, %p196
      %p199 = scmp.ne.s32.totalorder %s182, %s198
      %p200 = scmp.eq.s32.totalorder %s33, 0
      %p201 = por %p199, %p200
      %s202 = ssub.s32 %s27, %s34
      %p203 = scmp.eq.s32.totalorder %s202, 0
      %s205 = sadd.s32 %s204, 1
      %s206 = scalar_select %p203, %s204, %s205
      %p209 = pneg %p203
      %p210 = scmp.eq.s32.totalorder %s27, 1
      %p211 = por %p209, %p210
      %p212 = scmp.ne.s32.totalorder %s204, %s207
      %p213 = scmp.eq.s32.totalorder %s27, 0
      %p214 = por %p212, %p213
      %p215 = scmp.ne.s32.totalorder %s204, %s207
      %p216 = scmp.eq.s32.totalorder %s32, 1
      %p217 = por %p215, %p216
      %p218 = scmp.ne.s32.totalorder %s207, %s208
      %p219 = scmp.eq.s32.totalorder %s32, 0
      %p220 = por %p218, %p219
      %p221 = scmp.ne.s32.totalorder %s207, %s208
      %p222 = scmp.eq.s32.totalorder %s33, 1
      %p223 = por %p221, %p222
      %p225 = scmp.ne.s32.totalorder %s208, %s224
      %p226 = scmp.eq.s32.totalorder %s33, 0
      %p227 = por %p225, %p226
      %s228 = ssub.s32 %s27, %s34
      %p229 = scmp.eq.s32.totalorder %s228, 0
      %s231 = sadd.s32 %s230, 1
      %s232 = scalar_select %p229, %s230, %s231
      %p235 = pneg %p229
      %p236 = scmp.eq.s32.totalorder %s27, 1
      %p237 = por %p235, %p236
      %p238 = scmp.ne.s32.totalorder %s230, %s233
      %p239 = scmp.eq.s32.totalorder %s27, 0
      %p240 = por %p238, %p239
      %p241 = scmp.ne.s32.totalorder %s230, %s233
      %p242 = scmp.eq.s32.totalorder %s32, 1
      %p243 = por %p241, %p242
      %p244 = scmp.ne.s32.totalorder %s233, %s234
      %p245 = scmp.eq.s32.totalorder %s32, 0
      %p246 = por %p244, %p245
      %p247 = scmp.ne.s32.totalorder %s233, %s234
      %p248 = scmp.eq.s32.totalorder %s33, 1
      %p249 = por %p247, %p248
      %p251 = scmp.ne.s32.totalorder %s234, %s250
      %p252 = scmp.eq.s32.totalorder %s33, 0
      %p253 = por %p251, %p252
      %s254 = ssub.s32 %s27, %s34
      %p255 = scmp.eq.s32.totalorder %s254, 0
      %s257 = sadd.s32 %s256, 1
      %s258 = scalar_select %p255, %s256, %s257
      %p261 = pneg %p255
      %p262 = scmp.eq.s32.totalorder %s27, 1
      %p263 = por %p261, %p262
      %p264 = scmp.ne.s32.totalorder %s256, %s259
      %p265 = scmp.eq.s32.totalorder %s27, 0
      %p266 = por %p264, %p265
      %p267 = scmp.ne.s32.totalorder %s256, %s259
      %p268 = scmp.eq.s32.totalorder %s32, 1
      %p269 = por %p267, %p268
      %p270 = scmp.ne.s32.totalorder %s259, %s260
      %p271 = scmp.eq.s32.totalorder %s32, 0
      %p272 = por %p270, %p271
      %p273 = scmp.ne.s32.totalorder %s259, %s260
      %p274 = scmp.eq.s32.totalorder %s33, 1
      %p275 = por %p273, %p274
      %p277 = scmp.ne.s32.totalorder %s260, %s276
      %p278 = scmp.eq.s32.totalorder %s33, 0
      %p279 = por %p277, %p278
      %s281 = sadd.s32 %s280, 1
      %p284 = scmp.eq.s32.totalorder %s27, 1
      %p285 = scmp.ne.s32.totalorder %s280, %s282
      %p286 = scmp.eq.s32.totalorder %s27, 0
      %p287 = por %p285, %p286
      %p288 = scmp.ne.s32.totalorder %s280, %s282
      %p289 = scmp.eq.s32.totalorder %s32, 1
      %p290 = por %p288, %p289
      %p291 = scmp.ne.s32.totalorder %s282, %s283
      %p292 = scmp.eq.s32.totalorder %s32, 0
      %p293 = por %p291, %p292
      %p294 = scmp.ne.s32.totalorder %s282, %s283
      %p295 = scmp.eq.s32.totalorder %s33, 1
      %p296 = por %p294, %p295
      %p298 = scmp.ne.s32.totalorder %s283, %s297
      %p299 = scmp.eq.s32.totalorder %s33, 0
      %p300 = por %p298, %p299
      %p301 = scmp.le.s32.totalorder 1, %s27
      %p302 = scmp.lt.s32.totalorder %s27, 3
      %p303 = pnand %p301, %p302
      %p304 = pneg %p303
      // Predicated region
      $region9: #{tpu_custom_call.1} parent=5 // pred_check
        _
      $region10: #{tpu_custom_call.1} parent=5 // pred_check_branch
        %306 = sbr.rel (%p303) target = $region12
      $region11: #{tpu_custom_call.1} parent=5 // pred_region
        %s307 = ssub.s32 %s27, 1
        // Predicated region
        $region13: #{tpu_custom_call.1} parent=11 // pred_check
          %p308 = pneg %p48
        $region14: #{tpu_custom_call.1} parent=11 // pred_check_branch
          %310 = sbr.rel (%p308) target = $region16
        $region15: #{tpu_custom_call.1} parent=11 // pred_region
          %312 = vsyncadd [#allocation5], 0
          %s313 = sshll.u32 %s1, 4
          %s314 = int_to_ptr.hbm [resolvable:$true] %s313
          %s315 = sshll.u32 [#allocation4], 4
          %s316 = int_to_ptr.vmem [resolvable:$true] %s315
          %321 = dma.hbm_to_vmem [thread:$0]  %s314, 1024, %s316, [#allocation5], 64, 64, 4
        $region16: #{tpu_custom_call.1} parent=11 // pred_fallthru
          _
        // Predicated region
        $region17: #{tpu_custom_call.1} parent=11 // pred_check
          %p322 = pneg %p69
        $region18: #{tpu_custom_call.1} parent=11 // pred_check_branch
          %324 = sbr.rel (%p322) target = $region20
        $region19: #{tpu_custom_call.1} parent=11 // pred_region
          %326 = vsyncadd [#allocation8], 0
          %s327 = sshll.u32 %s2, 4
          %s328 = int_to_ptr.hbm [resolvable:$true] %s327
          %s329 = sshll.u32 [#allocation7], 4
          %s330 = int_to_ptr.vmem [resolvable:$true] %s329
          %335 = dma.hbm_to_vmem [thread:$0]  %s328, 2048, %s330, [#allocation8], 128, 128, 8
        $region20: #{tpu_custom_call.1} parent=11 // pred_fallthru
          _
        // Predicated region
        $region21: #{tpu_custom_call.1} parent=11 // pred_check
          %p336 = pneg %p90
        $region22: #{tpu_custom_call.1} parent=11 // pred_check_branch
          %338 = sbr.rel (%p336) target = $region24
        $region23: #{tpu_custom_call.1} parent=11 // pred_region
          %340 = vsyncadd [#allocation8], 0
          %s341 = sshll.u32 %s3, 4
          %s342 = int_to_ptr.hbm [resolvable:$true] %s341
          %s343 = sshll.u32 [#allocation9], 4
          %s344 = int_to_ptr.vmem [resolvable:$true] %s343
          %349 = dma.hbm_to_vmem [thread:$0]  %s342, 2048, %s344, [#allocation8], 128, 128, 8
        $region24: #{tpu_custom_call.1} parent=11 // pred_fallthru
          _
      $region12: #{tpu_custom_call.1} parent=5 // pred_fallthru
        _
      %p350 = scmp.lt.s32.totalorder %s27, 2
      // Predicated region
      $region25: #{tpu_custom_call.1} parent=5 // pred_check
        %p351 = pneg %p350
      $region26: #{tpu_custom_call.1} parent=5 // pred_check_branch
        %353 = sbr.rel (%p351) target = $region28
      $region27: #{tpu_custom_call.1} parent=5 // pred_region
        // Predicated region
        $region29: #{tpu_custom_call.1} parent=27 // pred_check
          %p354 = pneg %p110
        $region30: #{tpu_custom_call.1} parent=27 // pred_check_branch
          %356 = sbr.rel (%p354) target = $region32
        $region31: #{tpu_custom_call.1} parent=27 // pred_region
          %s357 = sand.u32 %s27, 1
          %s358 = scalar_lea.sflag [#allocation11], %s357
          %s359 = sand.u32 %s100, 1
          %s360 = smul.addr %s359, 128
          %s361 = scalar_lea.vmem [#allocation10], %s360
          %363 = vsyncadd %s358, 0
          %s364 = smul.addr %s27, 16
          %s365 = smul.addr %s364, 8
          %s366 = scalar_lea.hbm %s4, %s365
          %s367 = sshll.u32 %s366, 4
          %s368 = int_to_ptr.hbm [resolvable:$true] %s367
          %s369 = sshll.u32 %s361, 4
          %s370 = int_to_ptr.vmem [resolvable:$true] %s369
          %375 = dma.hbm_to_vmem [thread:$0]  %s368, 2048, %s370, %s358, 128, 128, 8
        $region32: #{tpu_custom_call.1} parent=27 // pred_fallthru
          _
        // Predicated region
        $region33: #{tpu_custom_call.1} parent=27 // pred_check
          %p376 = pneg %p136
        $region34: #{tpu_custom_call.1} parent=27 // pred_check_branch
          %378 = sbr.rel (%p376) target = $region36
        $region35: #{tpu_custom_call.1} parent=27 // pred_region
          %s379 = sand.u32 %s27, 1
          %s380 = scalar_lea.sflag [#allocation11], %s379
          %s381 = sand.u32 %s126, 1
          %s382 = smul.addr %s381, 128
          %s383 = scalar_lea.vmem [#allocation12], %s382
          %385 = vsyncadd %s380, 0
          %s386 = smul.addr %s27, 32
          %s387 = smul.addr %s386, 4
          %s388 = scalar_lea.hbm %s5, %s387
          %s389 = sshll.u32 %s388, 4
          %s390 = int_to_ptr.hbm [resolvable:$true] %s389
          %s391 = sshll.u32 %s383, 4
          %s392 = int_to_ptr.vmem [resolvable:$true] %s391
          %397 = dma.hbm_to_vmem [thread:$0]  %s390, 2048, %s392, %s380, 128, 128, 8
        $region36: #{tpu_custom_call.1} parent=27 // pred_fallthru
          _
        // Predicated region
        $region37: #{tpu_custom_call.1} parent=27 // pred_check
          %p398 = pneg %p162
        $region38: #{tpu_custom_call.1} parent=27 // pred_check_branch
          %400 = sbr.rel (%p398) target = $region40
        $region39: #{tpu_custom_call.1} parent=27 // pred_region
          %p401 = scmp.lt.s32.totalorder %s27, 1
          %s402 = scalar_select %p401, %s27, 1
          %s403 = smul.addr %s402, 2
          %s404 = scalar_lea.vmem %s6, %s403
        $region40: #{tpu_custom_call.1} parent=27 // pred_fallthru
          _
        // Predicated region
        $region41: #{tpu_custom_call.1} parent=27 // pred_check
          %p405 = pneg %p188
        $region42: #{tpu_custom_call.1} parent=27 // pred_check_branch
          %407 = sbr.rel (%p405) target = $region44
        $region43: #{tpu_custom_call.1} parent=27 // pred_region
          %s408 = sand.u32 %s178, 1
          %s409 = scalar_lea.sflag [#allocation14], %s408
          %s410 = sand.u32 %s178, 1
          %s411 = smul.addr %s410, 128
          %s412 = scalar_lea.vmem [#allocation13], %s411
          %414 = vsyncadd %s409, 0
          %s415 = smul.addr %s27, 32
          %s416 = smul.addr %s415, 4
          %s417 = scalar_lea.hbm %s7, %s416
          %s418 = sshll.u32 %s417, 4
          %s419 = int_to_ptr.hbm [resolvable:$true] %s418
          %s420 = sshll.u32 %s412, 4
          %s421 = int_to_ptr.vmem [resolvable:$true] %s420
          %426 = dma.hbm_to_vmem [thread:$0]  %s419, 2048, %s421, %s409, 64, 64, 4
        $region44: #{tpu_custom_call.1} parent=27 // pred_fallthru
          _
        // Predicated region
        $region45: #{tpu_custom_call.1} parent=27 // pred_check
          %p427 = pneg %p214
        $region46: #{tpu_custom_call.1} parent=27 // pred_check_branch
          %429 = sbr.rel (%p427) target = $region48
        $region47: #{tpu_custom_call.1} parent=27 // pred_region
          %p430 = scmp.lt.s32.totalorder %s27, 1
          %s431 = scalar_select %p430, %s27, 1
          %s432 = scalar_lea.vmem %s8, %s431
        $region48: #{tpu_custom_call.1} parent=27 // pred_fallthru
          _
        // Predicated region
        $region49: #{tpu_custom_call.1} parent=27 // pred_check
          %p433 = pneg %p240
        $region50: #{tpu_custom_call.1} parent=27 // pred_check_branch
          %435 = sbr.rel (%p433) target = $region52
        $region51: #{tpu_custom_call.1} parent=27 // pred_region
          %p436 = scmp.lt.s32.totalorder %s27, 1
          %s437 = scalar_select %p436, %s27, 1
          %s438 = scalar_lea.vmem %s9, %s437
        $region52: #{tpu_custom_call.1} parent=27 // pred_fallthru
          _
        // Predicated region
        $region53: #{tpu_custom_call.1} parent=27 // pred_check
          %p439 = pneg %p266
        $region54: #{tpu_custom_call.1} parent=27 // pred_check_branch
          %441 = sbr.rel (%p439) target = $region56
        $region55: #{tpu_custom_call.1} parent=27 // pred_region
          %p442 = scmp.lt.s32.totalorder %s27, 1
          %s443 = scalar_select %p442, %s27, 1
          %s444 = scalar_lea.vmem %s10, %s443
        $region56: #{tpu_custom_call.1} parent=27 // pred_fallthru
          _
      $region28: #{tpu_custom_call.1} parent=5 // pred_fallthru
        _
      %p445 = scmp.le.s32.totalorder 1, %s27
      %p446 = scmp.lt.s32.totalorder %s27, 3
      %p447 = pnand %p445, %p446
      %p448 = pneg %p447
      // Predicated region
      $region57: #{tpu_custom_call.1} parent=5 // pred_check
        _
      $region58: #{tpu_custom_call.1} parent=5 // pred_check_branch
        %450 = sbr.rel (%p447) target = $region60
      $region59: #{tpu_custom_call.1} parent=5 // pred_region
        %s451 = ssub.s32 %s27, 1
        // Predicated region
        $region61: #{tpu_custom_call.1} parent=59 // pred_check
          %p452 = pneg %p48
        $region62: #{tpu_custom_call.1} parent=59 // pred_check_branch
          %454 = sbr.rel (%p452) target = $region64
        $region63: #{tpu_custom_call.1} parent=59 // pred_region
          %456 = dma.done [#allocation5], 1024
        $region64: #{tpu_custom_call.1} parent=59 // pred_fallthru
          _
        // Predicated region
        $region65: #{tpu_custom_call.1} parent=59 // pred_check
          %p457 = pneg %p69
        $region66: #{tpu_custom_call.1} parent=59 // pred_check_branch
          %459 = sbr.rel (%p457) target = $region68
        $region67: #{tpu_custom_call.1} parent=59 // pred_region
          %461 = dma.done [#allocation8], 2048
        $region68: #{tpu_custom_call.1} parent=59 // pred_fallthru
          _
        // Predicated region
        $region69: #{tpu_custom_call.1} parent=59 // pred_check
          %p462 = pneg %p90
        $region70: #{tpu_custom_call.1} parent=59 // pred_check_branch
          %464 = sbr.rel (%p462) target = $region72
        $region71: #{tpu_custom_call.1} parent=59 // pred_region
          %466 = dma.done [#allocation8], 2048
        $region72: #{tpu_custom_call.1} parent=59 // pred_fallthru
          _
        %s467 = sand.u32 %s32, 1
        %s468 = scalar_lea.sflag [#allocation11], %s467
        %s469 = sand.u32 %s103, 1
        %s470 = smul.addr %s469, 128
        %s471 = scalar_lea.vmem [#allocation10], %s470
        // Predicated region
        $region73: #{tpu_custom_call.1} parent=59 // pred_check
          %p472 = pneg %p116
        $region74: #{tpu_custom_call.1} parent=59 // pred_check_branch
          %474 = sbr.rel (%p472) target = $region76
        $region75: #{tpu_custom_call.1} parent=59 // pred_region
          %476 = dma.done %s468, 2048
        $region76: #{tpu_custom_call.1} parent=59 // pred_fallthru
          _
        %s477 = sand.u32 %s32, 1
        %s478 = scalar_lea.sflag [#allocation11], %s477
        %s479 = sand.u32 %s129, 1
        %s480 = smul.addr %s479, 128
        %s481 = scalar_lea.vmem [#allocation12], %s480
        // Predicated region
        $region77: #{tpu_custom_call.1} parent=59 // pred_check
          %p482 = pneg %p142
        $region78: #{tpu_custom_call.1} parent=59 // pred_check_branch
          %484 = sbr.rel (%p482) target = $region80
        $region79: #{tpu_custom_call.1} parent=59 // pred_region
          %486 = dma.done %s478, 2048
        $region80: #{tpu_custom_call.1} parent=59 // pred_fallthru
          _
        %s487 = sand.u32 %s181, 1
        %s488 = scalar_lea.sflag [#allocation14], %s487
        %s489 = sand.u32 %s181, 1
        %s490 = smul.addr %s489, 128
        %s491 = scalar_lea.vmem [#allocation13], %s490
        // Predicated region
        $region81: #{tpu_custom_call.1} parent=59 // pred_check
          %p492 = pneg %p194
        $region82: #{tpu_custom_call.1} parent=59 // pred_check_branch
          %494 = sbr.rel (%p492) target = $region84
        $region83: #{tpu_custom_call.1} parent=59 // pred_region
          %496 = dma.done %s488, 2048
        $region84: #{tpu_custom_call.1} parent=59 // pred_fallthru
          _
        %p497 = pneg %p48
        %p498 = pneg %p45
        %p499 = pneg %p69
        %p500 = pneg %p66
        %p501 = pneg %p90
        %p502 = pneg %p87
        %s503 = sand.u32 %s32, 1
        %s504 = scalar_lea.sflag [#allocation11], %s503
        %s505 = sand.u32 %s103, 1
        %s506 = smul.addr %s505, 128
        %s507 = scalar_lea.vmem [#allocation10], %s506
        %p508 = pneg %p116
        %p509 = pneg %p113
        %s510 = sand.u32 %s32, 1
        %s511 = scalar_lea.sflag [#allocation11], %s510
        %s512 = sand.u32 %s129, 1
        %s513 = smul.addr %s512, 128
        %s514 = scalar_lea.vmem [#allocation12], %s513
        %p515 = pneg %p142
        %p516 = pneg %p139
        %p517 = scmp.lt.s32.totalorder %s32, 1
        %s518 = scalar_select %p517, %s32, 1
        %s519 = smul.addr %s518, 2
        %s520 = scalar_lea.vmem %s6, %s519
        %p521 = pneg %p168
        %p522 = pneg %p165
        %s523 = sand.u32 %s181, 1
        %s524 = scalar_lea.sflag [#allocation14], %s523
        %s525 = sand.u32 %s181, 1
        %s526 = smul.addr %s525, 128
        %s527 = scalar_lea.vmem [#allocation13], %s526
        %p528 = pneg %p194
        %p529 = pneg %p191
        %p530 = scmp.lt.s32.totalorder %s32, 1
        %s531 = scalar_select %p530, %s32, 1
        %s532 = scalar_lea.vmem %s8, %s531
        %p533 = pneg %p220
        %p534 = pneg %p217
        %p535 = scmp.lt.s32.totalorder %s32, 1
        %s536 = scalar_select %p535, %s32, 1
        %s537 = scalar_lea.vmem %s9, %s536
        %p538 = pneg %p246
        %p539 = pneg %p243
        %p540 = scmp.lt.s32.totalorder %s32, 1
        %s541 = scalar_select %p540, %s32, 1
        %s542 = scalar_lea.vmem %s10, %s541
        %p543 = pneg %p272
        %p544 = pneg %p269
        %p545 = pneg %p293
        %p546 = pneg %p290
        %p547 = scmp.lt.s32.totalorder %s32, 1
        %s548 = scalar_select %p547, %s32, 1
        %s549 = smul.addr %s548, 2
        %s550 = scalar_lea.vmem %s6, %s549
        %p551 = scmp.lt.s32.totalorder %s32, 1
        %s552 = scalar_select %p551, %s32, 1
        %s553 = scalar_lea.vmem %s8, %s552
        %p554 = scmp.lt.s32.totalorder %s32, 1
        %s555 = scalar_select %p554, %s32, 1
        %s556 = scalar_lea.vmem %s9, %s555
        %p557 = scmp.lt.s32.totalorder %s32, 1
        %s558 = scalar_select %p557, %s32, 1
        %s559 = scalar_lea.vmem %s10, %s558
        %p560 = scmp.eq.s32.totalorder %s32, 1
        %p561 = scmp.eq.s32.totalorder %s32, 0
        // Predicated region
        $region85: #{tpu_custom_call.1} parent=59 // pred_check
          %p562 = pneg %p561
        $region86: #{tpu_custom_call.1} parent=59 // pred_check_branch
          %564 = sbr.rel (%p562) target = $region88
        $region87: #{tpu_custom_call.1} parent=59 // pred_region
          %v565 = vld [vmem:[#allocation7] sm:$0xff]
          %v566 = vld [vmem:[#allocation7 + $0x8] sm:$0xff]
          %v567 = vld [vmem:[#allocation7 + $0x10] sm:$0xff]
          %v568 = vld [vmem:[#allocation7 + $0x18] sm:$0xff]
          %v569 = vld [vmem:[#allocation7 + $0x20] sm:$0xff]
          %v570 = vld [vmem:[#allocation7 + $0x28] sm:$0xff]
          %v571 = vld [vmem:[#allocation7 + $0x30] sm:$0xff]
          %v572 = vld [vmem:[#allocation7 + $0x38] sm:$0xff]
          %v573 = vld [vmem:[#allocation7 + $0x40] sm:$0xff]
          %v574 = vld [vmem:[#allocation7 + $0x48] sm:$0xff]
          %v575 = vld [vmem:[#allocation7 + $0x50] sm:$0xff]
          %v576 = vld [vmem:[#allocation7 + $0x58] sm:$0xff]
          %v577 = vld [vmem:[#allocation7 + $0x60] sm:$0xff]
          %v578 = vld [vmem:[#allocation7 + $0x68] sm:$0xff]
          %v579 = vld [vmem:[#allocation7 + $0x70] sm:$0xff]
          %v580 = vld [vmem:[#allocation7 + $0x78] sm:$0xff]
          %581 = vst [vmem:[#allocation15] sm:$0xff] %v565
          %582 = vst [vmem:[#allocation15 + $0x8] sm:$0xff] %v566
          %583 = vst [vmem:[#allocation15 + $0x10] sm:$0xff] %v567
          %584 = vst [vmem:[#allocation15 + $0x18] sm:$0xff] %v568
          %585 = vst [vmem:[#allocation15 + $0x20] sm:$0xff] %v569
          %586 = vst [vmem:[#allocation15 + $0x28] sm:$0xff] %v570
          %587 = vst [vmem:[#allocation15 + $0x30] sm:$0xff] %v571
          %588 = vst [vmem:[#allocation15 + $0x38] sm:$0xff] %v572
          %589 = vst [vmem:[#allocation15 + $0x40] sm:$0xff] %v573
          %590 = vst [vmem:[#allocation15 + $0x48] sm:$0xff] %v574
          %591 = vst [vmem:[#allocation15 + $0x50] sm:$0xff] %v575
          %592 = vst [vmem:[#allocation15 + $0x58] sm:$0xff] %v576
          %593 = vst [vmem:[#allocation15 + $0x60] sm:$0xff] %v577
          %594 = vst [vmem:[#allocation15 + $0x68] sm:$0xff] %v578
          %595 = vst [vmem:[#allocation15 + $0x70] sm:$0xff] %v579
          %596 = vst [vmem:[#allocation15 + $0x78] sm:$0xff] %v580
        $region88: #{tpu_custom_call.1} parent=59 // pred_fallthru
          _
        %v597 = vld [vmem:[#allocation15] sm:$0xff]
        %v598 = vld [vmem:[#allocation15 + $0x8] sm:$0xff]
        %v599 = vld [vmem:[#allocation15 + $0x10] sm:$0xff]
        %v600 = vld [vmem:[#allocation15 + $0x18] sm:$0xff]
        %v601 = vld [vmem:[#allocation15 + $0x20] sm:$0xff]
        %v602 = vld [vmem:[#allocation15 + $0x28] sm:$0xff]
        %v603 = vld [vmem:[#allocation15 + $0x30] sm:$0xff]
        %v604 = vld [vmem:[#allocation15 + $0x38] sm:$0xff]
        %v605 = vld [vmem:[#allocation15 + $0x40] sm:$0xff]
        %v606 = vld [vmem:[#allocation15 + $0x48] sm:$0xff]
        %v607 = vld [vmem:[#allocation15 + $0x50] sm:$0xff]
        %v608 = vld [vmem:[#allocation15 + $0x58] sm:$0xff]
        %v609 = vld [vmem:[#allocation15 + $0x60] sm:$0xff]
        %v610 = vld [vmem:[#allocation15 + $0x68] sm:$0xff]
        %v611 = vld [vmem:[#allocation15 + $0x70] sm:$0xff]
        %v612 = vld [vmem:[#allocation15 + $0x78] sm:$0xff]
        %v613 = vpack.c.bf16 %v598, %v597
        %v614 = vpack.c.bf16 %v600, %v599
        %v615 = vpack.c.bf16 %v602, %v601
        %v616 = vpack.c.bf16 %v604, %v603
        %v617 = vpack.c.bf16 %v606, %v605
        %v618 = vpack.c.bf16 %v608, %v607
        %v619 = vpack.c.bf16 %v610, %v609
        %v620 = vpack.c.bf16 %v612, %v611
        %v621 = vld [vmem:[#allocation9] sm:$0xff]
        %v622 = vld [vmem:[#allocation9 + $0x8] sm:$0xff]
        %v623 = vld [vmem:[#allocation9 + $0x10] sm:$0xff]
        %v624 = vld [vmem:[#allocation9 + $0x18] sm:$0xff]
        %v625 = vld [vmem:[#allocation9 + $0x20] sm:$0xff]
        %v626 = vld [vmem:[#allocation9 + $0x28] sm:$0xff]
        %v627 = vld [vmem:[#allocation9 + $0x30] sm:$0xff]
        %v628 = vld [vmem:[#allocation9 + $0x38] sm:$0xff]
        %v629 = vld [vmem:[#allocation9 + $0x40] sm:$0xff]
        %v630 = vld [vmem:[#allocation9 + $0x48] sm:$0xff]
        %v631 = vld [vmem:[#allocation9 + $0x50] sm:$0xff]
        %v632 = vld [vmem:[#allocation9 + $0x58] sm:$0xff]
        %v633 = vld [vmem:[#allocation9 + $0x60] sm:$0xff]
        %v634 = vld [vmem:[#allocation9 + $0x68] sm:$0xff]
        %v635 = vld [vmem:[#allocation9 + $0x70] sm:$0xff]
        %v636 = vld [vmem:[#allocation9 + $0x78] sm:$0xff]
        %v637 = vld [vmem:[%s471] sm:$0xff]
        %v638 = vld [vmem:[%s471 + $0x8] sm:$0xff]
        %v639 = vld [vmem:[%s471 + $0x10] sm:$0xff]
        %v640 = vld [vmem:[%s471 + $0x18] sm:$0xff]
        %v641 = vld [vmem:[%s471 + $0x20] sm:$0xff]
        %v642 = vld [vmem:[%s471 + $0x28] sm:$0xff]
        %v643 = vld [vmem:[%s471 + $0x30] sm:$0xff]
        %v644 = vld [vmem:[%s471 + $0x38] sm:$0xff]
        %v645 = vld [vmem:[%s471 + $0x40] sm:$0xff]
        %v646 = vld [vmem:[%s471 + $0x48] sm:$0xff]
        %v647 = vld [vmem:[%s471 + $0x50] sm:$0xff]
        %v648 = vld [vmem:[%s471 + $0x58] sm:$0xff]
        %v649 = vld [vmem:[%s471 + $0x60] sm:$0xff]
        %v650 = vld [vmem:[%s471 + $0x68] sm:$0xff]
        %v651 = vld [vmem:[%s471 + $0x70] sm:$0xff]
        %v652 = vld [vmem:[%s471 + $0x78] sm:$0xff]
        %653 = vmatpush.msra.mxu0 %v652
        %654 = vmatpush.msra.mxu0 %v651
        %655 = vmatpush.msra.mxu0 %v650
        %656 = vmatpush.msra.mxu0 %v649
        %657 = vmatpush.msra.mxu0 %v648
        %658 = vmatpush.msra.mxu0 %v647
        %659 = vmatpush.msra.mxu0 %v646
        %660 = vmatpush.msra.mxu0 %v645
        %661 = vmatpush.msra.mxu0 %v644
        %662 = vmatpush.msra.mxu0 %v643
        %663 = vmatpush.msra.mxu0 %v642
        %664 = vmatpush.msra.mxu0 %v641
        %665 = vmatpush.msra.mxu0 %v640
        %666 = vmatpush.msra.mxu0 %v639
        %667 = vmatpush.msra.mxu0 %v638
        %668 = vmatpush.msra.mxu0 %v637
        %669 = vmatmul.f32.gmra.mxu0 %v621
        %v670 = vpop.f32.mrf.mxu0
        %v671 = vadd.f32 0.0, %v670
        %672 = vmatmul.f32.gmra.mxu0 %v622
        %v673 = vpop.f32.mrf.mxu0
        %v674 = vadd.f32 0.0, %v673
        %675 = vmatmul.f32.gmra.mxu0 %v623
        %v676 = vpop.f32.mrf.mxu0
        %v677 = vadd.f32 0.0, %v676
        %678 = vmatmul.f32.gmra.mxu0 %v624
        %v679 = vpop.f32.mrf.mxu0
        %v680 = vadd.f32 0.0, %v679
        %681 = vmatmul.f32.gmra.mxu0 %v625
        %v682 = vpop.f32.mrf.mxu0
        %v683 = vadd.f32 0.0, %v682
        %684 = vmatmul.f32.gmra.mxu0 %v626
        %v685 = vpop.f32.mrf.mxu0
        %v686 = vadd.f32 0.0, %v685
        %687 = vmatmul.f32.gmra.mxu0 %v627
        %v688 = vpop.f32.mrf.mxu0
        %v689 = vadd.f32 0.0, %v688
        %690 = vmatmul.f32.gmra.mxu0 %v628
        %v691 = vpop.f32.mrf.mxu0
        %v692 = vadd.f32 0.0, %v691
        %693 = vmatmul.f32.gmra.mxu0 %v629
        %v694 = vpop.f32.mrf.mxu0
        %v695 = vadd.f32 0.0, %v694
        %696 = vmatmul.f32.gmra.mxu0 %v630
        %v697 = vpop.f32.mrf.mxu0
        %v698 = vadd.f32 0.0, %v697
        %699 = vmatmul.f32.gmra.mxu0 %v631
        %v700 = vpop.f32.mrf.mxu0
        %v701 = vadd.f32 0.0, %v700
        %702 = vmatmul.f32.gmra.mxu0 %v632
        %v703 = vpop.f32.mrf.mxu0
        %v704 = vadd.f32 0.0, %v703
        %705 = vmatmul.f32.gmra.mxu0 %v633
        %v706 = vpop.f32.mrf.mxu0
        %v707 = vadd.f32 0.0, %v706
        %708 = vmatmul.f32.gmra.mxu0 %v634
        %v709 = vpop.f32.mrf.mxu0
        %v710 = vadd.f32 0.0, %v709
        %711 = vmatmul.f32.gmra.mxu0 %v635
        %v712 = vpop.f32.mrf.mxu0
        %v713 = vadd.f32 0.0, %v712
        %714 = vmatmul.f32.gmra.mxu0 %v636
        %v715 = vpop.f32.mrf.mxu0
        %v716 = vadd.f32 0.0, %v715
        %717 = vdwg.mxu0
        %v718 = vld [vmem:[#allocation4] sm:$0xf]
        %v719 = vld [vmem:[#allocation4 + $0x4] sm:$0xf]
        %v720 = vld [vmem:[#allocation4 + $0x8] sm:$0xf]
        %v721 = vld [vmem:[#allocation4 + $0xc] sm:$0xf]
        %v722 = vld [vmem:[#allocation4 + $0x10] sm:$0xf]
        %v723 = vld [vmem:[#allocation4 + $0x14] sm:$0xf]
        %v724 = vld [vmem:[#allocation4 + $0x18] sm:$0xf]
        %v725 = vld [vmem:[#allocation4 + $0x1c] sm:$0xf]
        %v726 = vld [vmem:[#allocation4 + $0x20] sm:$0xf]
        %v727 = vld [vmem:[#allocation4 + $0x24] sm:$0xf]
        %v728 = vld [vmem:[#allocation4 + $0x28] sm:$0xf]
        %v729 = vld [vmem:[#allocation4 + $0x2c] sm:$0xf]
        %v730 = vld [vmem:[#allocation4 + $0x30] sm:$0xf]
        %v731 = vld [vmem:[#allocation4 + $0x34] sm:$0xf]
        %v732 = vld [vmem:[#allocation4 + $0x38] sm:$0xf]
        %v733 = vld [vmem:[#allocation4 + $0x3c] sm:$0xf]
        %v750 = vunpack.c.l.b16 %v718
        %v751 = vunpack.c.l.b16 %v719
        %v752 = vunpack.c.l.b16 %v720
        %v753 = vunpack.c.l.b16 %v721
        %v754 = vunpack.c.l.b16 %v722
        %v755 = vunpack.c.l.b16 %v723
        %v756 = vunpack.c.l.b16 %v724
        %v757 = vunpack.c.l.b16 %v725
        %v758 = vunpack.c.l.b16 %v726
        %v759 = vunpack.c.l.b16 %v727
        %v760 = vunpack.c.l.b16 %v728
        %v761 = vunpack.c.l.b16 %v729
        %v762 = vunpack.c.l.b16 %v730
        %v763 = vunpack.c.l.b16 %v731
        %v764 = vunpack.c.l.b16 %v732
        %v765 = vunpack.c.l.b16 %v733
        %v766 = vpack.c.b16 %v751, %v750
        %v767 = vpack.c.b16 %v753, %v752
        %v768 = vpack.c.b16 %v755, %v754
        %v769 = vpack.c.b16 %v757, %v756
        %v770 = vpack.c.b16 %v759, %v758
        %v771 = vpack.c.b16 %v761, %v760
        %v772 = vpack.c.b16 %v763, %v762
        %v773 = vpack.c.b16 %v765, %v764
        %782 = vmatpush.bf16.msra.mxu0 %v620
        %783 = vmatpush.bf16.msra.mxu0 %v619
        %784 = vmatpush.bf16.msra.mxu0 %v618
        %785 = vmatpush.bf16.msra.mxu0 %v617
        %786 = vmatpush.bf16.msra.mxu0 %v616
        %787 = vmatpush.bf16.msra.mxu0 %v615
        %788 = vmatpush.bf16.msra.mxu0 %v614
        %789 = vmatpush.bf16.msra.mxu0 %v613
        %790 = vmatmul.bf16.gmra.mxu0 %v766
        %v791 = vpop.f32.mrf.mxu0
        %v792 = vadd.f32 %v671, %v791
        %v793 = vpop.f32.mrf.mxu0
        %v794 = vadd.f32 %v674, %v793
        %795 = vmatmul.bf16.gmra.mxu0 %v767
        %v796 = vpop.f32.mrf.mxu0
        %v797 = vadd.f32 %v677, %v796
        %v798 = vpop.f32.mrf.mxu0
        %v799 = vadd.f32 %v680, %v798
        %800 = vmatmul.bf16.gmra.mxu0 %v768
        %v801 = vpop.f32.mrf.mxu0
        %v802 = vadd.f32 %v683, %v801
        %v803 = vpop.f32.mrf.mxu0
        %v804 = vadd.f32 %v686, %v803
        %805 = vmatmul.bf16.gmra.mxu0 %v769
        %v806 = vpop.f32.mrf.mxu0
        %v807 = vadd.f32 %v689, %v806
        %v808 = vpop.f32.mrf.mxu0
        %v809 = vadd.f32 %v692, %v808
        %810 = vmatmul.bf16.gmra.mxu0 %v770
        %v811 = vpop.f32.mrf.mxu0
        %v812 = vadd.f32 %v695, %v811
        %v813 = vpop.f32.mrf.mxu0
        %v814 = vadd.f32 %v698, %v813
        %815 = vmatmul.bf16.gmra.mxu0 %v771
        %v816 = vpop.f32.mrf.mxu0
        %v817 = vadd.f32 %v701, %v816
        %v818 = vpop.f32.mrf.mxu0
        %v819 = vadd.f32 %v704, %v818
        %820 = vmatmul.bf16.gmra.mxu0 %v772
        %v821 = vpop.f32.mrf.mxu0
        %v822 = vadd.f32 %v707, %v821
        %v823 = vpop.f32.mrf.mxu0
        %v824 = vadd.f32 %v710, %v823
        %825 = vmatmul.bf16.gmra.mxu0 %v773
        %v826 = vpop.f32.mrf.mxu0
        %v827 = vadd.f32 %v713, %v826
        %v828 = vpop.f32.mrf.mxu0
        %v829 = vadd.f32 %v716, %v828
        %830 = vdwg.mxu0
        %v831 = vpack.c.bf16 %v794, %v792
        %v832 = vpack.c.bf16 %v799, %v797
        %v833 = vpack.c.bf16 %v804, %v802
        %v834 = vpack.c.bf16 %v809, %v807
        %v835 = vpack.c.bf16 %v814, %v812
        %v836 = vpack.c.bf16 %v819, %v817
        %v837 = vpack.c.bf16 %v824, %v822
        %v838 = vpack.c.bf16 %v829, %v827
        %v839 = vld [vmem:[%s481] sm:$0xff]
        %v840 = vld [vmem:[%s481 + $0x8] sm:$0xff]
        %v841 = vld [vmem:[%s481 + $0x10] sm:$0xff]
        %v842 = vld [vmem:[%s481 + $0x18] sm:$0xff]
        %v843 = vld [vmem:[%s481 + $0x20] sm:$0xff]
        %v844 = vld [vmem:[%s481 + $0x28] sm:$0xff]
        %v845 = vld [vmem:[%s481 + $0x30] sm:$0xff]
        %v846 = vld [vmem:[%s481 + $0x38] sm:$0xff]
        %v847 = vld [vmem:[%s481 + $0x40] sm:$0xff]
        %v848 = vld [vmem:[%s481 + $0x48] sm:$0xff]
        %v849 = vld [vmem:[%s481 + $0x50] sm:$0xff]
        %v850 = vld [vmem:[%s481 + $0x58] sm:$0xff]
        %v851 = vld [vmem:[%s481 + $0x60] sm:$0xff]
        %v852 = vld [vmem:[%s481 + $0x68] sm:$0xff]
        %v853 = vld [vmem:[%s481 + $0x70] sm:$0xff]
        %v854 = vld [vmem:[%s481 + $0x78] sm:$0xff]
        %v855 = vld [vmem:[%s550] sm:$0x3]
        %v857 = vperm.slane %v855, 0
        %v858 = vperm.slane %v855, 1
        %v877 = vunpack.c.l.b16 %v839
        %v878 = vunpack.c.h.b16 %v839
        %v879 = vunpack.c.l.b16 %v840
        %v880 = vunpack.c.h.b16 %v840
        %v881 = vunpack.c.l.b16 %v841
        %v882 = vunpack.c.h.b16 %v841
        %v883 = vunpack.c.l.b16 %v842
        %v884 = vunpack.c.h.b16 %v842
        %v885 = vunpack.c.l.b16 %v843
        %v886 = vunpack.c.h.b16 %v843
        %v887 = vunpack.c.l.b16 %v844
        %v888 = vunpack.c.h.b16 %v844
        %v889 = vunpack.c.l.b16 %v845
        %v890 = vunpack.c.h.b16 %v845
        %v891 = vunpack.c.l.b16 %v846
        %v892 = vunpack.c.h.b16 %v846
        %v893 = vunpack.c.l.b16 %v847
        %v894 = vunpack.c.h.b16 %v847
        %v895 = vunpack.c.l.b16 %v848
        %v896 = vunpack.c.h.b16 %v848
        %v897 = vunpack.c.l.b16 %v849
        %v898 = vunpack.c.h.b16 %v849
        %v899 = vunpack.c.l.b16 %v850
        %v900 = vunpack.c.h.b16 %v850
        %v901 = vunpack.c.l.b16 %v851
        %v902 = vunpack.c.h.b16 %v851
        %v903 = vunpack.c.l.b16 %v852
        %v904 = vunpack.c.h.b16 %v852
        %v905 = vunpack.c.l.b16 %v853
        %v906 = vunpack.c.h.b16 %v853
        %v907 = vunpack.c.l.b16 %v854
        %v908 = vunpack.c.h.b16 %v854
        %v909 = vpack.c.b16 %v879, %v877
        %v910 = vpack.c.b16 %v880, %v878
        %v911 = vpack.c.b16 %v883, %v881
        %v912 = vpack.c.b16 %v884, %v882
        %v913 = vpack.c.b16 %v887, %v885
        %v914 = vpack.c.b16 %v888, %v886
        %v915 = vpack.c.b16 %v891, %v889
        %v916 = vpack.c.b16 %v892, %v890
        %v917 = vpack.c.b16 %v895, %v893
        %v918 = vpack.c.b16 %v896, %v894
        %v919 = vpack.c.b16 %v899, %v897
        %v920 = vpack.c.b16 %v900, %v898
        %v921 = vpack.c.b16 %v903, %v901
        %v922 = vpack.c.b16 %v904, %v902
        %v923 = vpack.c.b16 %v907, %v905
        %v924 = vpack.c.b16 %v908, %v906
        %941 = vmatpush.bf16.msra.mxu0 %v923
        %942 = vmatpush.bf16.msra.mxu0 %v921
        %943 = vmatpush.bf16.msra.mxu0 %v919
        %944 = vmatpush.bf16.msra.mxu0 %v917
        %945 = vmatpush.bf16.msra.mxu0 %v915
        %946 = vmatpush.bf16.msra.mxu0 %v913
        %947 = vmatpush.bf16.msra.mxu0 %v911
        %948 = vmatpush.bf16.msra.mxu0 %v909
        %949 = vmatmul.bf16.gmra.mxu0 %v831
        %v950 = vpop.f32.mrf.mxu0
        %v951 = vadd.f32 %v857, %v950
        %v952 = vpop.f32.mrf.mxu0
        %v953 = vadd.f32 %v857, %v952
        %954 = vmatmul.bf16.gmra.mxu0 %v832
        %v955 = vpop.f32.mrf.mxu0
        %v956 = vadd.f32 %v857, %v955
        %v957 = vpop.f32.mrf.mxu0
        %v958 = vadd.f32 %v857, %v957
        %959 = vmatmul.bf16.gmra.mxu0 %v833
        %v960 = vpop.f32.mrf.mxu0
        %v961 = vadd.f32 %v857, %v960
        %v962 = vpop.f32.mrf.mxu0
        %v963 = vadd.f32 %v857, %v962
        %964 = vmatmul.bf16.gmra.mxu0 %v834
        %v965 = vpop.f32.mrf.mxu0
        %v966 = vadd.f32 %v857, %v965
        %v967 = vpop.f32.mrf.mxu0
        %v968 = vadd.f32 %v857, %v967
        %969 = vmatmul.bf16.gmra.mxu0 %v835
        %v970 = vpop.f32.mrf.mxu0
        %v971 = vadd.f32 %v857, %v970
        %v972 = vpop.f32.mrf.mxu0
        %v973 = vadd.f32 %v857, %v972
        %974 = vmatmul.bf16.gmra.mxu0 %v836
        %v975 = vpop.f32.mrf.mxu0
        %v976 = vadd.f32 %v857, %v975
        %v977 = vpop.f32.mrf.mxu0
        %v978 = vadd.f32 %v857, %v977
        %979 = vmatmul.bf16.gmra.mxu0 %v837
        %v980 = vpop.f32.mrf.mxu0
        %v981 = vadd.f32 %v857, %v980
        %v982 = vpop.f32.mrf.mxu0
        %v983 = vadd.f32 %v857, %v982
        %984 = vmatmul.bf16.gmra.mxu0 %v838
        %v985 = vpop.f32.mrf.mxu0
        %v986 = vadd.f32 %v857, %v985
        %v987 = vpop.f32.mrf.mxu0
        %v988 = vadd.f32 %v857, %v987
        %989 = vdwg.mxu0
        %990 = vmatpush.bf16.msra.mxu0 %v924
        %991 = vmatpush.bf16.msra.mxu0 %v922
        %992 = vmatpush.bf16.msra.mxu0 %v920
        %993 = vmatpush.bf16.msra.mxu0 %v918
        %994 = vmatpush.bf16.msra.mxu0 %v916
        %995 = vmatpush.bf16.msra.mxu0 %v914
        %996 = vmatpush.bf16.msra.mxu0 %v912
        %997 = vmatpush.bf16.msra.mxu0 %v910
        %998 = vmatmul.bf16.gmra.mxu0 %v831
        %v999 = vpop.f32.mrf.mxu0
        %v1000 = vadd.f32 %v858, %v999
        %v1001 = vpop.f32.mrf.mxu0
        %v1002 = vadd.f32 %v858, %v1001
        %1003 = vmatmul.bf16.gmra.mxu0 %v832
        %v1004 = vpop.f32.mrf.mxu0
        %v1005 = vadd.f32 %v858, %v1004
        %v1006 = vpop.f32.mrf.mxu0
        %v1007 = vadd.f32 %v858, %v1006
        %1008 = vmatmul.bf16.gmra.mxu0 %v833
        %v1009 = vpop.f32.mrf.mxu0
        %v1010 = vadd.f32 %v858, %v1009
        %v1011 = vpop.f32.mrf.mxu0
        %v1012 = vadd.f32 %v858, %v1011
        %1013 = vmatmul.bf16.gmra.mxu0 %v834
        %v1014 = vpop.f32.mrf.mxu0
        %v1015 = vadd.f32 %v858, %v1014
        %v1016 = vpop.f32.mrf.mxu0
        %v1017 = vadd.f32 %v858, %v1016
        %1018 = vmatmul.bf16.gmra.mxu0 %v835
        %v1019 = vpop.f32.mrf.mxu0
        %v1020 = vadd.f32 %v858, %v1019
        %v1021 = vpop.f32.mrf.mxu0
        %v1022 = vadd.f32 %v858, %v1021
        %1023 = vmatmul.bf16.gmra.mxu0 %v836
        %v1024 = vpop.f32.mrf.mxu0
        %v1025 = vadd.f32 %v858, %v1024
        %v1026 = vpop.f32.mrf.mxu0
        %v1027 = vadd.f32 %v858, %v1026
        %1028 = vmatmul.bf16.gmra.mxu0 %v837
        %v1029 = vpop.f32.mrf.mxu0
        %v1030 = vadd.f32 %v858, %v1029
        %v1031 = vpop.f32.mrf.mxu0
        %v1032 = vadd.f32 %v858, %v1031
        %1033 = vmatmul.bf16.gmra.mxu0 %v838
        %v1034 = vpop.f32.mrf.mxu0
        %v1035 = vadd.f32 %v858, %v1034
        %v1036 = vpop.f32.mrf.mxu0
        %v1037 = vadd.f32 %v858, %v1036
        %1038 = vdwg.mxu0
        %v1039 = vmax.f32 %v951, 0.0
        %v1040 = vmax.f32 %v1000, 0.0
        %v1041 = vmax.f32 %v953, 0.0
        %v1042 = vmax.f32 %v1002, 0.0
        %v1043 = vmax.f32 %v956, 0.0
        %v1044 = vmax.f32 %v1005, 0.0
        %v1045 = vmax.f32 %v958, 0.0
        %v1046 = vmax.f32 %v1007, 0.0
        %v1047 = vmax.f32 %v961, 0.0
        %v1048 = vmax.f32 %v1010, 0.0
        %v1049 = vmax.f32 %v963, 0.0
        %v1050 = vmax.f32 %v1012, 0.0
        %v1051 = vmax.f32 %v966, 0.0
        %v1052 = vmax.f32 %v1015, 0.0
        %v1053 = vmax.f32 %v968, 0.0
        %v1054 = vmax.f32 %v1017, 0.0
        %v1055 = vmax.f32 %v971, 0.0
        %v1056 = vmax.f32 %v1020, 0.0
        %v1057 = vmax.f32 %v973, 0.0
        %v1058 = vmax.f32 %v1022, 0.0
        %v1059 = vmax.f32 %v976, 0.0
        %v1060 = vmax.f32 %v1025, 0.0
        %v1061 = vmax.f32 %v978, 0.0
        %v1062 = vmax.f32 %v1027, 0.0
        %v1063 = vmax.f32 %v981, 0.0
        %v1064 = vmax.f32 %v1030, 0.0
        %v1065 = vmax.f32 %v983, 0.0
        %v1066 = vmax.f32 %v1032, 0.0
        %v1067 = vmax.f32 %v986, 0.0
        %v1068 = vmax.f32 %v1035, 0.0
        %v1069 = vmax.f32 %v988, 0.0
        %v1070 = vmax.f32 %v1037, 0.0
        %v1071 = vpack.c.bf16 %v1041, %v1039
        %v1072 = vpack.c.bf16 %v1042, %v1040
        %v1073 = vpack.c.bf16 %v1045, %v1043
        %v1074 = vpack.c.bf16 %v1046, %v1044
        %v1075 = vpack.c.bf16 %v1049, %v1047
        %v1076 = vpack.c.bf16 %v1050, %v1048
        %v1077 = vpack.c.bf16 %v1053, %v1051
        %v1078 = vpack.c.bf16 %v1054, %v1052
        %v1079 = vpack.c.bf16 %v1057, %v1055
        %v1080 = vpack.c.bf16 %v1058, %v1056
        %v1081 = vpack.c.bf16 %v1061, %v1059
        %v1082 = vpack.c.bf16 %v1062, %v1060
        %v1083 = vpack.c.bf16 %v1065, %v1063
        %v1084 = vpack.c.bf16 %v1066, %v1064
        %v1085 = vpack.c.bf16 %v1069, %v1067
        %v1086 = vpack.c.bf16 %v1070, %v1068
        %v1087 = vld [vmem:[%s491] sm:$0xf]
        %v1088 = vld [vmem:[%s491 + $0x4] sm:$0xf]
        %v1089 = vld [vmem:[%s491 + $0x8] sm:$0xf]
        %v1090 = vld [vmem:[%s491 + $0xc] sm:$0xf]
        %v1091 = vld [vmem:[%s491 + $0x10] sm:$0xf]
        %v1092 = vld [vmem:[%s491 + $0x14] sm:$0xf]
        %v1093 = vld [vmem:[%s491 + $0x18] sm:$0xf]
        %v1094 = vld [vmem:[%s491 + $0x1c] sm:$0xf]
        %v1095 = vld [vmem:[%s491 + $0x20] sm:$0xf]
        %v1096 = vld [vmem:[%s491 + $0x24] sm:$0xf]
        %v1097 = vld [vmem:[%s491 + $0x28] sm:$0xf]
        %v1098 = vld [vmem:[%s491 + $0x2c] sm:$0xf]
        %v1099 = vld [vmem:[%s491 + $0x30] sm:$0xf]
        %v1100 = vld [vmem:[%s491 + $0x34] sm:$0xf]
        %v1101 = vld [vmem:[%s491 + $0x38] sm:$0xf]
        %v1102 = vld [vmem:[%s491 + $0x3c] sm:$0xf]
        %v1103 = vld [vmem:[%s491 + $0x40] sm:$0xf]
        %v1104 = vld [vmem:[%s491 + $0x44] sm:$0xf]
        %v1105 = vld [vmem:[%s491 + $0x48] sm:$0xf]
        %v1106 = vld [vmem:[%s491 + $0x4c] sm:$0xf]
        %v1107 = vld [vmem:[%s491 + $0x50] sm:$0xf]
        %v1108 = vld [vmem:[%s491 + $0x54] sm:$0xf]
        %v1109 = vld [vmem:[%s491 + $0x58] sm:$0xf]
        %v1110 = vld [vmem:[%s491 + $0x5c] sm:$0xf]
        %v1111 = vld [vmem:[%s491 + $0x60] sm:$0xf]
        %v1112 = vld [vmem:[%s491 + $0x64] sm:$0xf]
        %v1113 = vld [vmem:[%s491 + $0x68] sm:$0xf]
        %v1114 = vld [vmem:[%s491 + $0x6c] sm:$0xf]
        %v1115 = vld [vmem:[%s491 + $0x70] sm:$0xf]
        %v1116 = vld [vmem:[%s491 + $0x74] sm:$0xf]
        %v1117 = vld [vmem:[%s491 + $0x78] sm:$0xf]
        %v1118 = vld [vmem:[%s491 + $0x7c] sm:$0xf]
        %v1119 = vld [vmem:[%s553] sm:$0x1]
        %v1121 = vperm.slane %v1119, 0
        %v1155 = vunpack.c.l.b16 %v1087
        %v1156 = vunpack.c.l.b16 %v1088
        %v1157 = vunpack.c.l.b16 %v1089
        %v1158 = vunpack.c.l.b16 %v1090
        %v1159 = vunpack.c.l.b16 %v1091
        %v1160 = vunpack.c.l.b16 %v1092
        %v1161 = vunpack.c.l.b16 %v1093
        %v1162 = vunpack.c.l.b16 %v1094
        %v1163 = vunpack.c.l.b16 %v1095
        %v1164 = vunpack.c.l.b16 %v1096
        %v1165 = vunpack.c.l.b16 %v1097
        %v1166 = vunpack.c.l.b16 %v1098
        %v1167 = vunpack.c.l.b16 %v1099
        %v1168 = vunpack.c.l.b16 %v1100
        %v1169 = vunpack.c.l.b16 %v1101
        %v1170 = vunpack.c.l.b16 %v1102
        %v1171 = vunpack.c.l.b16 %v1103
        %v1172 = vunpack.c.l.b16 %v1104
        %v1173 = vunpack.c.l.b16 %v1105
        %v1174 = vunpack.c.l.b16 %v1106
        %v1175 = vunpack.c.l.b16 %v1107
        %v1176 = vunpack.c.l.b16 %v1108
        %v1177 = vunpack.c.l.b16 %v1109
        %v1178 = vunpack.c.l.b16 %v1110
        %v1179 = vunpack.c.l.b16 %v1111
        %v1180 = vunpack.c.l.b16 %v1112
        %v1181 = vunpack.c.l.b16 %v1113
        %v1182 = vunpack.c.l.b16 %v1114
        %v1183 = vunpack.c.l.b16 %v1115
        %v1184 = vunpack.c.l.b16 %v1116
        %v1185 = vunpack.c.l.b16 %v1117
        %v1186 = vunpack.c.l.b16 %v1118
        %v1187 = vpack.c.b16 %v1156, %v1155
        %v1188 = vpack.c.b16 %v1158, %v1157
        %v1189 = vpack.c.b16 %v1160, %v1159
        %v1190 = vpack.c.b16 %v1162, %v1161
        %v1191 = vpack.c.b16 %v1164, %v1163
        %v1192 = vpack.c.b16 %v1166, %v1165
        %v1193 = vpack.c.b16 %v1168, %v1167
        %v1194 = vpack.c.b16 %v1170, %v1169
        %v1195 = vpack.c.b16 %v1172, %v1171
        %v1196 = vpack.c.b16 %v1174, %v1173
        %v1197 = vpack.c.b16 %v1176, %v1175
        %v1198 = vpack.c.b16 %v1178, %v1177
        %v1199 = vpack.c.b16 %v1180, %v1179
        %v1200 = vpack.c.b16 %v1182, %v1181
        %v1201 = vpack.c.b16 %v1184, %v1183
        %v1202 = vpack.c.b16 %v1186, %v1185
        %1219 = vmatpush.bf16.msra.mxu0 %v1194
        %1220 = vmatpush.bf16.msra.mxu0 %v1193
        %1221 = vmatpush.bf16.msra.mxu0 %v1192
        %1222 = vmatpush.bf16.msra.mxu0 %v1191
        %1223 = vmatpush.bf16.msra.mxu0 %v1190
        %1224 = vmatpush.bf16.msra.mxu0 %v1189
        %1225 = vmatpush.bf16.msra.mxu0 %v1188
        %1226 = vmatpush.bf16.msra.mxu0 %v1187
        %1227 = vmatmul.bf16.gmra.mxu0 %v1071
        %v1228 = vpop.f32.mrf.mxu0
        %v1229 = vadd.f32 %v1121, %v1228
        %v1230 = vpop.f32.mrf.mxu0
        %v1231 = vadd.f32 %v1121, %v1230
        %1232 = vmatmul.bf16.gmra.mxu0 %v1073
        %v1233 = vpop.f32.mrf.mxu0
        %v1234 = vadd.f32 %v1121, %v1233
        %v1235 = vpop.f32.mrf.mxu0
        %v1236 = vadd.f32 %v1121, %v1235
        %1237 = vmatmul.bf16.gmra.mxu0 %v1075
        %v1238 = vpop.f32.mrf.mxu0
        %v1239 = vadd.f32 %v1121, %v1238
        %v1240 = vpop.f32.mrf.mxu0
        %v1241 = vadd.f32 %v1121, %v1240
        %1242 = vmatmul.bf16.gmra.mxu0 %v1077
        %v1243 = vpop.f32.mrf.mxu0
        %v1244 = vadd.f32 %v1121, %v1243
        %v1245 = vpop.f32.mrf.mxu0
        %v1246 = vadd.f32 %v1121, %v1245
        %1247 = vmatmul.bf16.gmra.mxu0 %v1079
        %v1248 = vpop.f32.mrf.mxu0
        %v1249 = vadd.f32 %v1121, %v1248
        %v1250 = vpop.f32.mrf.mxu0
        %v1251 = vadd.f32 %v1121, %v1250
        %1252 = vmatmul.bf16.gmra.mxu0 %v1081
        %v1253 = vpop.f32.mrf.mxu0
        %v1254 = vadd.f32 %v1121, %v1253
        %v1255 = vpop.f32.mrf.mxu0
        %v1256 = vadd.f32 %v1121, %v1255
        %1257 = vmatmul.bf16.gmra.mxu0 %v1083
        %v1258 = vpop.f32.mrf.mxu0
        %v1259 = vadd.f32 %v1121, %v1258
        %v1260 = vpop.f32.mrf.mxu0
        %v1261 = vadd.f32 %v1121, %v1260
        %1262 = vmatmul.bf16.gmra.mxu0 %v1085
        %v1263 = vpop.f32.mrf.mxu0
        %v1264 = vadd.f32 %v1121, %v1263
        %v1265 = vpop.f32.mrf.mxu0
        %v1266 = vadd.f32 %v1121, %v1265
        %1267 = vdwg.mxu0
        %1268 = vmatpush.bf16.msra.mxu0 %v1202
        %1269 = vmatpush.bf16.msra.mxu0 %v1201
        %1270 = vmatpush.bf16.msra.mxu0 %v1200
        %1271 = vmatpush.bf16.msra.mxu0 %v1199
        %1272 = vmatpush.bf16.msra.mxu0 %v1198
        %1273 = vmatpush.bf16.msra.mxu0 %v1197
        %1274 = vmatpush.bf16.msra.mxu0 %v1196
        %1275 = vmatpush.bf16.msra.mxu0 %v1195
        %1276 = vmatmul.bf16.gmra.mxu0 %v1072
        %v1277 = vpop.f32.mrf.mxu0
        %v1278 = vadd.f32 %v1229, %v1277
        %v1279 = vpop.f32.mrf.mxu0
        %v1280 = vadd.f32 %v1231, %v1279
        %1281 = vmatmul.bf16.gmra.mxu0 %v1074
        %v1282 = vpop.f32.mrf.mxu0
        %v1283 = vadd.f32 %v1234, %v1282
        %v1284 = vpop.f32.mrf.mxu0
        %v1285 = vadd.f32 %v1236, %v1284
        %1286 = vmatmul.bf16.gmra.mxu0 %v1076
        %v1287 = vpop.f32.mrf.mxu0
        %v1288 = vadd.f32 %v1239, %v1287
        %v1289 = vpop.f32.mrf.mxu0
        %v1290 = vadd.f32 %v1241, %v1289
        %1291 = vmatmul.bf16.gmra.mxu0 %v1078
        %v1292 = vpop.f32.mrf.mxu0
        %v1293 = vadd.f32 %v1244, %v1292
        %v1294 = vpop.f32.mrf.mxu0
        %v1295 = vadd.f32 %v1246, %v1294
        %1296 = vmatmul.bf16.gmra.mxu0 %v1080
        %v1297 = vpop.f32.mrf.mxu0
        %v1298 = vadd.f32 %v1249, %v1297
        %v1299 = vpop.f32.mrf.mxu0
        %v1300 = vadd.f32 %v1251, %v1299
        %1301 = vmatmul.bf16.gmra.mxu0 %v1082
        %v1302 = vpop.f32.mrf.mxu0
        %v1303 = vadd.f32 %v1254, %v1302
        %v1304 = vpop.f32.mrf.mxu0
        %v1305 = vadd.f32 %v1256, %v1304
        %1306 = vmatmul.bf16.gmra.mxu0 %v1084
        %v1307 = vpop.f32.mrf.mxu0
        %v1308 = vadd.f32 %v1259, %v1307
        %v1309 = vpop.f32.mrf.mxu0
        %v1310 = vadd.f32 %v1261, %v1309
        %1311 = vmatmul.bf16.gmra.mxu0 %v1086
        %v1312 = vpop.f32.mrf.mxu0
        %v1313 = vadd.f32 %v1264, %v1312
        %v1314 = vpop.f32.mrf.mxu0
        %v1315 = vadd.f32 %v1266, %v1314
        %1316 = vdwg.mxu0
        %s1317 = sld [smem:[#allocation3]]
        %v1318 = vlaneseq
        %v1319 = vshrl.u32 %v1318, 7
        %v1320 = vadd.s32 %v1319, 8
        %v1321 = vadd.s32 %v1319, 16
        %v1322 = vadd.s32 %v1319, 24
        %v1323 = vadd.s32 %v1319, 32
        %v1324 = vadd.s32 %v1319, 40
        %v1325 = vadd.s32 %v1319, 48
        %v1326 = vadd.s32 %v1319, 56
        %v1327 = vadd.s32 %v1319, 64
        %v1328 = vadd.s32 %v1319, 72
        %v1329 = vadd.s32 %v1319, 80
        %v1330 = vadd.s32 %v1319, 88
        %v1331 = vadd.s32 %v1319, 96
        %v1332 = vadd.s32 %v1319, 104
        %v1333 = vadd.s32 %v1319, 112
        %v1334 = vadd.s32 %v1319, 120
        %v1335 = vstv %s1317
        %vm1336 = vcmp.lt.s32.totalorder %v1319, %v1335
        %vm1337 = vcmp.lt.s32.totalorder %v1320, %v1335
        %vm1338 = vcmp.lt.s32.totalorder %v1321, %v1335
        %vm1339 = vcmp.lt.s32.totalorder %v1322, %v1335
        %vm1340 = vcmp.lt.s32.totalorder %v1323, %v1335
        %vm1341 = vcmp.lt.s32.totalorder %v1324, %v1335
        %vm1342 = vcmp.lt.s32.totalorder %v1325, %v1335
        %vm1343 = vcmp.lt.s32.totalorder %v1326, %v1335
        %vm1344 = vcmp.lt.s32.totalorder %v1327, %v1335
        %vm1345 = vcmp.lt.s32.totalorder %v1328, %v1335
        %vm1346 = vcmp.lt.s32.totalorder %v1329, %v1335
        %vm1347 = vcmp.lt.s32.totalorder %v1330, %v1335
        %vm1348 = vcmp.lt.s32.totalorder %v1331, %v1335
        %vm1349 = vcmp.lt.s32.totalorder %v1332, %v1335
        %vm1350 = vcmp.lt.s32.totalorder %v1333, %v1335
        %vm1351 = vcmp.lt.s32.totalorder %v1334, %v1335
        %v1352 = vsel %vm1336, 1, 0
        %v1353 = vsel %vm1337, 1, 0
        %v1354 = vsel %vm1338, 1, 0
        %v1355 = vsel %vm1339, 1, 0
        %v1356 = vsel %vm1340, 1, 0
        %v1357 = vsel %vm1341, 1, 0
        %v1358 = vsel %vm1342, 1, 0
        %v1359 = vsel %vm1343, 1, 0
        %v1360 = vsel %vm1344, 1, 0
        %v1361 = vsel %vm1345, 1, 0
        %v1362 = vsel %vm1346, 1, 0
        %v1363 = vsel %vm1347, 1, 0
        %v1364 = vsel %vm1348, 1, 0
        %v1365 = vsel %vm1349, 1, 0
        %v1366 = vsel %vm1350, 1, 0
        %v1367 = vsel %vm1351, 1, 0
        %v1368 = vcvt.s32.f32 %v1352
        %v1369 = vcvt.s32.f32 %v1353
        %v1370 = vcvt.s32.f32 %v1354
        %v1371 = vcvt.s32.f32 %v1355
        %v1372 = vcvt.s32.f32 %v1356
        %v1373 = vcvt.s32.f32 %v1357
        %v1374 = vcvt.s32.f32 %v1358
        %v1375 = vcvt.s32.f32 %v1359
        %v1376 = vcvt.s32.f32 %v1360
        %v1377 = vcvt.s32.f32 %v1361
        %v1378 = vcvt.s32.f32 %v1362
        %v1379 = vcvt.s32.f32 %v1363
        %v1380 = vcvt.s32.f32 %v1364
        %v1381 = vcvt.s32.f32 %v1365
        %v1382 = vcvt.s32.f32 %v1366
        %v1383 = vcvt.s32.f32 %v1367
        %v1384 = vmul.f32 %v1278, %v1368
        %v1385 = vmul.f32 %v1280, %v1369
        %v1386 = vmul.f32 %v1283, %v1370
        %v1387 = vmul.f32 %v1285, %v1371
        %v1388 = vmul.f32 %v1288, %v1372
        %v1389 = vmul.f32 %v1290, %v1373
        %v1390 = vmul.f32 %v1293, %v1374
        %v1391 = vmul.f32 %v1295, %v1375
        %v1392 = vmul.f32 %v1298, %v1376
        %v1393 = vmul.f32 %v1300, %v1377
        %v1394 = vmul.f32 %v1303, %v1378
        %v1395 = vmul.f32 %v1305, %v1379
        %v1396 = vmul.f32 %v1308, %v1380
        %v1397 = vmul.f32 %v1310, %v1381
        %v1398 = vmul.f32 %v1313, %v1382
        %v1399 = vmul.f32 %v1315, %v1383
        %s1400 = scvt.s32.f32 %s1317
        %v1401 = vstv %s1400
        %v1402 = vrcp.pop %v1401
        %v1403 = vmul.f32 %v1401, %v1402
        %v1404 = vsub.f32 1.0, %v1403
        %v1405 = vmul.f32 %v1402, %v1404
        %v1406 = vadd.f32 %v1402, %v1405
        %vm1407 = vweird.f32 %v1401
        %vm1408 = vweird.f32 %v1402
        %vm1409 = vmor %vm1407, %vm1408
        %v1410 = vsel %vm1409, %v1402, %v1406
        %v1411 = vand.u32 2147483647, %v1401
        %vm1412 = vcmp.eq.f32.partialorder %v1411, 8.507059e+37
        %v1413 = vand.u32 %v1401, 2147483648
        %v1414 = vor.u32 1.1754944e-38, %v1413
        %v1415 = vsel %vm1412, %v1414, %v1410
        %s1416 = vtos %v1415
        %v1417 = vadd.f32 %v1384, %v1385
        %v1418 = vadd.f32 %v1417, %v1386
        %v1419 = vadd.f32 %v1418, %v1387
        %v1420 = vadd.f32 %v1419, %v1388
        %v1421 = vadd.f32 %v1420, %v1389
        %v1422 = vadd.f32 %v1421, %v1390
        %v1423 = vadd.f32 %v1422, %v1391
        %v1424 = vadd.f32 %v1423, %v1392
        %v1425 = vadd.f32 %v1424, %v1393
        %v1426 = vadd.f32 %v1425, %v1394
        %v1427 = vadd.f32 %v1426, %v1395
        %v1428 = vadd.f32 %v1427, %v1396
        %v1429 = vadd.f32 %v1428, %v1397
        %v1430 = vadd.f32 %v1429, %v1398
        %v1431 = vadd.f32 %v1430, %v1399
        %v1432 = vrot.slane %v1431, 4
        %v1433 = vadd.f32 %v1431, %v1432
        %v1434 = vrot.slane %v1433, 2
        %v1435 = vadd.f32 %v1433, %v1434
        %v1436 = vrot.slane %v1435, 1
        %v1437 = vadd.f32 %v1435, %v1436
        %v1438 = vstv %s1416
        %v1439 = vmul.f32 %v1437, %v1438
        %v1440 = vmul.f32 %v1384, %v1384
        %v1441 = vmul.f32 %v1385, %v1385
        %v1442 = vmul.f32 %v1386, %v1386
        %v1443 = vmul.f32 %v1387, %v1387
        %v1444 = vmul.f32 %v1388, %v1388
        %v1445 = vmul.f32 %v1389, %v1389
        %v1446 = vmul.f32 %v1390, %v1390
        %v1447 = vmul.f32 %v1391, %v1391
        %v1448 = vmul.f32 %v1392, %v1392
        %v1449 = vmul.f32 %v1393, %v1393
        %v1450 = vmul.f32 %v1394, %v1394
        %v1451 = vmul.f32 %v1395, %v1395
        %v1452 = vmul.f32 %v1396, %v1396
        %v1453 = vmul.f32 %v1397, %v1397
        %v1454 = vmul.f32 %v1398, %v1398
        %v1455 = vmul.f32 %v1399, %v1399
        %v1456 = vadd.f32 %v1440, %v1441
        %v1457 = vadd.f32 %v1456, %v1442
        %v1458 = vadd.f32 %v1457, %v1443
        %v1459 = vadd.f32 %v1458, %v1444
        %v1460 = vadd.f32 %v1459, %v1445
        %v1461 = vadd.f32 %v1460, %v1446
        %v1462 = vadd.f32 %v1461, %v1447
        %v1463 = vadd.f32 %v1462, %v1448
        %v1464 = vadd.f32 %v1463, %v1449
        %v1465 = vadd.f32 %v1464, %v1450
        %v1466 = vadd.f32 %v1465, %v1451
        %v1467 = vadd.f32 %v1466, %v1452
        %v1468 = vadd.f32 %v1467, %v1453
        %v1469 = vadd.f32 %v1468, %v1454
        %v1470 = vadd.f32 %v1469, %v1455
        %v1471 = vrot.slane %v1470, 4
        %v1472 = vadd.f32 %v1470, %v1471
        %v1473 = vrot.slane %v1472, 2
        %v1474 = vadd.f32 %v1472, %v1473
        %v1475 = vrot.slane %v1474, 1
        %v1476 = vadd.f32 %v1474, %v1475
        %v1477 = vmul.f32 %v1476, %v1438
        %v1478 = vmul.f32 %v1439, %v1439
        %v1479 = vsub.f32 %v1477, %v1478
        %v1480 = vmax.f32 %v1479, 0.0
        %v1481 = vld [vmem:[%s556] sm:$0x1]
        %v1482 = vadd.f32 %v1480, 1e-05
        %v1483 = vrsqrt.pop %v1482
        %v1484 = vmul.f32 %v1483, %v1482
        %v1485 = vmul.f32 %v1484, %v1483
        %v1486 = vmul.f32 0.5, %v1485
        %v1487 = vsub.f32 1.5, %v1486
        %v1488 = vmul.f32 %v1483, %v1487
        %vm1489 = vweird.f32 %v1482
        %vm1490 = vweird.f32 %v1483
        %vm1491 = vmor %vm1489, %vm1490
        %v1492 = vsel %vm1491, %v1483, %v1488
        %v1493 = vmul.f32 %v1481, %v1492
        %v1494 = vld [vmem:[%s559] sm:$0x1]
        %v1495 = vmul.f32 %v1439, %v1493
        %v1496 = vsub.f32 %v1494, %v1495
        %v1498 = vperm.slane %v1493, 0
        %v1500 = vmul.f32 %v1278, %v1498
        %v1501 = vmul.f32 %v1280, %v1498
        %v1502 = vmul.f32 %v1283, %v1498
        %v1503 = vmul.f32 %v1285, %v1498
        %v1504 = vmul.f32 %v1288, %v1498
        %v1505 = vmul.f32 %v1290, %v1498
        %v1506 = vmul.f32 %v1293, %v1498
        %v1507 = vmul.f32 %v1295, %v1498
        %v1508 = vmul.f32 %v1298, %v1498
        %v1509 = vmul.f32 %v1300, %v1498
        %v1510 = vmul.f32 %v1303, %v1498
        %v1511 = vmul.f32 %v1305, %v1498
        %v1512 = vmul.f32 %v1308, %v1498
        %v1513 = vmul.f32 %v1310, %v1498
        %v1514 = vmul.f32 %v1313, %v1498
        %v1515 = vmul.f32 %v1315, %v1498
        %v1517 = vperm.slane %v1496, 0
        %v1519 = vadd.f32 %v1500, %v1517
        %v1520 = vadd.f32 %v1501, %v1517
        %v1521 = vadd.f32 %v1502, %v1517
        %v1522 = vadd.f32 %v1503, %v1517
        %v1523 = vadd.f32 %v1504, %v1517
        %v1524 = vadd.f32 %v1505, %v1517
        %v1525 = vadd.f32 %v1506, %v1517
        %v1526 = vadd.f32 %v1507, %v1517
        %v1527 = vadd.f32 %v1508, %v1517
        %v1528 = vadd.f32 %v1509, %v1517
        %v1529 = vadd.f32 %v1510, %v1517
        %v1530 = vadd.f32 %v1511, %v1517
        %v1531 = vadd.f32 %v1512, %v1517
        %v1532 = vadd.f32 %v1513, %v1517
        %v1533 = vadd.f32 %v1514, %v1517
        %v1534 = vadd.f32 %v1515, %v1517
        %p1535 = scmp.ne.s32.totalorder %s32, 1
        // Predicated region
        $region89: #{tpu_custom_call.1} parent=59 // pred_check
          %p1536 = pneg %p1535
        $region90: #{tpu_custom_call.1} parent=59 // pred_check_branch
          %1538 = sbr.rel (%p1536) target = $region92
        $region91: #{tpu_custom_call.1} parent=59 // pred_region
          %v1539 = vmax.f32 %v1519, 0.0
          %v1540 = vmax.f32 %v1520, 0.0
          %v1541 = vmax.f32 %v1521, 0.0
          %v1542 = vmax.f32 %v1522, 0.0
          %v1543 = vmax.f32 %v1523, 0.0
          %v1544 = vmax.f32 %v1524, 0.0
          %v1545 = vmax.f32 %v1525, 0.0
          %v1546 = vmax.f32 %v1526, 0.0
          %v1547 = vmax.f32 %v1527, 0.0
          %v1548 = vmax.f32 %v1528, 0.0
          %v1549 = vmax.f32 %v1529, 0.0
          %v1550 = vmax.f32 %v1530, 0.0
          %v1551 = vmax.f32 %v1531, 0.0
          %v1552 = vmax.f32 %v1532, 0.0
          %v1553 = vmax.f32 %v1533, 0.0
          %v1554 = vmax.f32 %v1534, 0.0
          %1555 = vst [vmem:[#allocation15] sm:$0xff] %v1539
          %1556 = vst [vmem:[#allocation15 + $0x8] sm:$0xff] %v1540
          %1557 = vst [vmem:[#allocation15 + $0x10] sm:$0xff] %v1541
          %1558 = vst [vmem:[#allocation15 + $0x18] sm:$0xff] %v1542
          %1559 = vst [vmem:[#allocation15 + $0x20] sm:$0xff] %v1543
          %1560 = vst [vmem:[#allocation15 + $0x28] sm:$0xff] %v1544
          %1561 = vst [vmem:[#allocation15 + $0x30] sm:$0xff] %v1545
          %1562 = vst [vmem:[#allocation15 + $0x38] sm:$0xff] %v1546
          %1563 = vst [vmem:[#allocation15 + $0x40] sm:$0xff] %v1547
          %1564 = vst [vmem:[#allocation15 + $0x48] sm:$0xff] %v1548
          %1565 = vst [vmem:[#allocation15 + $0x50] sm:$0xff] %v1549
          %1566 = vst [vmem:[#allocation15 + $0x58] sm:$0xff] %v1550
          %1567 = vst [vmem:[#allocation15 + $0x60] sm:$0xff] %v1551
          %1568 = vst [vmem:[#allocation15 + $0x68] sm:$0xff] %v1552
          %1569 = vst [vmem:[#allocation15 + $0x70] sm:$0xff] %v1553
          %1570 = vst [vmem:[#allocation15 + $0x78] sm:$0xff] %v1554
        $region92: #{tpu_custom_call.1} parent=59 // pred_fallthru
          _
        // Predicated region
        $region93: #{tpu_custom_call.1} parent=59 // pred_check
          %p1571 = pneg %p560
        $region94: #{tpu_custom_call.1} parent=59 // pred_check_branch
          %1573 = sbr.rel (%p1571) target = $region96
        $region95: #{tpu_custom_call.1} parent=59 // pred_region
          %1574 = vst [vmem:[#allocation15] sm:$0xff] %v1519
          %1575 = vst [vmem:[#allocation15 + $0x8] sm:$0xff] %v1520
          %1576 = vst [vmem:[#allocation15 + $0x10] sm:$0xff] %v1521
          %1577 = vst [vmem:[#allocation15 + $0x18] sm:$0xff] %v1522
          %1578 = vst [vmem:[#allocation15 + $0x20] sm:$0xff] %v1523
          %1579 = vst [vmem:[#allocation15 + $0x28] sm:$0xff] %v1524
          %1580 = vst [vmem:[#allocation15 + $0x30] sm:$0xff] %v1525
          %1581 = vst [vmem:[#allocation15 + $0x38] sm:$0xff] %v1526
          %1582 = vst [vmem:[#allocation15 + $0x40] sm:$0xff] %v1527
          %1583 = vst [vmem:[#allocation15 + $0x48] sm:$0xff] %v1528
          %1584 = vst [vmem:[#allocation15 + $0x50] sm:$0xff] %v1529
          %1585 = vst [vmem:[#allocation15 + $0x58] sm:$0xff] %v1530
          %1586 = vst [vmem:[#allocation15 + $0x60] sm:$0xff] %v1531
          %1587 = vst [vmem:[#allocation15 + $0x68] sm:$0xff] %v1532
          %1588 = vst [vmem:[#allocation15 + $0x70] sm:$0xff] %v1533
          %1589 = vst [vmem:[#allocation15 + $0x78] sm:$0xff] %v1534
        $region96: #{tpu_custom_call.1} parent=59 // pred_fallthru
          _
        // Predicated region
        $region97: #{tpu_custom_call.1} parent=59 // pred_check
          %p1590 = pneg %p290
        $region98: #{tpu_custom_call.1} parent=59 // pred_check_branch
          %1592 = sbr.rel (%p1590) target = $region100
        $region99: #{tpu_custom_call.1} parent=59 // pred_region
          %1594 = vsyncadd [#allocation6], 0
          %s1595 = sshll.u32 [#allocation15], 4
          %s1596 = int_to_ptr.vmem [resolvable:$true] %s1595
          %s1597 = sshll.u32 %s11, 4
          %s1598 = int_to_ptr.hbm [resolvable:$true] %s1597
          %1603 = dma.vmem_to_hbm [thread:$0]  %s1596, 2048, %s1598, [#allocation6], 128, 128, 8
        $region100: #{tpu_custom_call.1} parent=59 // pred_fallthru
          _
        // Predicated region
        $region101: #{tpu_custom_call.1} parent=59 // pred_check
          %p1604 = pneg %p290
        $region102: #{tpu_custom_call.1} parent=59 // pred_check_branch
          %1606 = sbr.rel (%p1604) target = $region104
        $region103: #{tpu_custom_call.1} parent=59 // pred_region
          %1608 = dma.done [#allocation6], 2048
        $region104: #{tpu_custom_call.1} parent=59 // pred_fallthru
          _
      $region60: #{tpu_custom_call.1} parent=5 // pred_fallthru
        _
      %p1609 = scmp.le.s32.totalorder 2, %s27
      // Predicated region
      $region105: #{tpu_custom_call.1} parent=5 // pred_check
        %p1610 = pneg %p1609
      $region106: #{tpu_custom_call.1} parent=5 // pred_check_branch
        %1612 = sbr.rel (%p1610) target = $region108
      $region107: #{tpu_custom_call.1} parent=5 // pred_region
        %s1613 = ssub.s32 %s27, 2
      $region108: #{tpu_custom_call.1} parent=5 // pred_fallthru
        _
    $region6: #{tpu_custom_call.1} parent=1 // loop_footer
      %s31 = sadd.s32 1, %s27
    $region7: #{tpu_custom_call.1} parent=1 // loop_footer_branch
      %26 = sbr.rel target = $region3
    $region8: #{tpu_custom_call.1} parent=1 // loop_exit
      _
    %1614 = vsyncpa [#allocation5], 1
    %s1615 = scalar_lea.sflag [#allocation5], 1
    %1616 = vsyncpa %s1615, 1
    %1617 = vsyncpa [#allocation8], 1
    %1618 = vsyncpa [#allocation11], 1
    %s1619 = scalar_lea.sflag [#allocation11], 1
    %1620 = vsyncpa %s1619, 1
    %1621 = vsyncpa [#allocation14], 1
    %s1622 = scalar_lea.sflag [#allocation14], 1
    %1623 = vsyncpa %s1622, 1
    %1624 = vsyncpa [#allocation6], 1
    %s1625 = scalar_lea.sflag [#allocation6], 1
    %1626 = vsyncpa %s1625, 1

</llo_original>
